<compile_context>
chip_gen: v5e
topology: v5e:2x2
jax: 0.10.0
libtpu: 0.0.40
codegen_flags: <defaults>
</compile_context>

<pallas_src>
import functools
import math

import jax
import jax.numpy as jnp
from jax.experimental import pallas as pl
from jax.experimental.pallas import tpu as pltpu

# ----------------------------- config ---------------------------------------
FPN_OUT_CHANNELS = 16
CLASS_NUM = 4
PRIOR = 0.01
STRIDES = (4, 8, 16)
MAX_DETECTION_BOXES_NUM = 50
ADD_CENTERNESS = True
SCORE_THRESHOLD = 0.05          # TODO(synk): used only by the skipped post-process/NMS
NMS_IOU_THRESHOLD = 0.6         # TODO(synk): used only by the skipped post-process/NMS


# ---------------- Pallas kernel: 1x1 conv (lane-dense, fused epilogue) -------
def _conv1x1_kernel(x_ref, w_ref, b_ref, o_ref, *, activation):
    # x_ref: [1, Cin, tm]   w_ref: [Cout, Cin]   b_ref: [Cout, 1]   o_ref: [1, Cout, tm]
    acc = jnp.dot(w_ref[...], x_ref[0], preferred_element_type=jnp.float32)
    acc = acc + b_ref[...]
    if activation == "relu":
        acc = jnp.maximum(acc, 0.0)
    elif activation == "exp":
        acc = jnp.exp(acc)
    o_ref[0] = acc.astype(o_ref.dtype)


def conv1x1(x, w, b, activation=None, out_dtype=jnp.float32, tm_max=16384):
    """1x1 conv in channels-first layout: x [B, Cin, M] -> [B, Cout, M].

    Output block is [Cout, tm] with the big point axis in lanes (lane-dense).
    relu / exp epilogues are fused into the kernel.
    """
    B, Cin, M = x.shape
    Cout = w.shape[0]
    tm = M if M <= tm_max else tm_max          # full dim or big multiple of 128
    kernel = functools.partial(_conv1x1_kernel, activation=activation)
    return pl.pallas_call(
        kernel,
        out_shape=jax.ShapeDtypeStruct((B, Cout, M), out_dtype),
        grid=(B, pl.cdiv(M, tm)),
        in_specs=[
            pl.BlockSpec((1, Cin, tm), lambda bi, mi: (bi, 0, mi)),
            pl.BlockSpec((Cout, Cin), lambda bi, mi: (0, 0)),
            pl.BlockSpec((Cout, 1), lambda bi, mi: (0, 0)),
        ],
        out_specs=pl.BlockSpec((1, Cout, tm), lambda bi, mi: (bi, 0, mi)),
        compiler_params=pltpu.CompilerParams(
            dimension_semantics=("parallel", "parallel")),
    )(x, w, b.reshape(Cout, 1))


# ------- Pallas kernel: fused level conv + shared head + DetectHead epilogue -------
def _fcos_level_kernel(x_ref, wl_ref, bl_ref, wh_ref, bh_ref, coords_ref,
                       feat_ref, det_ref, *, num_classes, img_h, img_w, n_valid):
    # x_ref:      [1, Cin, tn] bf16   wl_ref: [Cf, Cin] bf16   bl_ref: [Cf, 1] f32
    # wh_ref:     [Ch, Cf]     bf16   bh_ref: [Ch, 1]   f32
    # coords_ref: [2, tn] f32 (row 0: x, row 1: y)
    # feat_ref:   [1, Cf, tn] bf16 (level feature, feeds next level's downsample)
    # det_ref:    [1, 8, tn]  f32  (rows: score, class, x1, y1, x2, y2, pad, pad)
    feat = jnp.dot(wl_ref[...], x_ref[0], preferred_element_type=jnp.float32)
    feat = jnp.maximum(feat + bl_ref[...], 0.0)                    # [Cf, tn] f32
    feat_bf = feat.astype(feat_ref.dtype)
    feat_ref[0] = feat_bf

    # shared cls/cnt/reg head, fused (MXU is <7% utilized; this dot is free)
    head = jnp.dot(wh_ref[...], feat_bf, preferred_element_type=jnp.float32)
    head = head + bh_ref[...]                                      # [Ch, tn] f32

    C = num_classes
    cls_preds = jax.nn.sigmoid(head[0:C, :])                       # [C, tn]
    cnt_pred = jax.nn.sigmoid(head[C:C + 1, :])                    # [1, tn]
    reg = jnp.exp(head[C + 1:C + 5, :])                            # [4, tn]

    max_score = jnp.max(cls_preds, axis=0, keepdims=True)          # [1, tn]
    c_idx = jax.lax.broadcasted_iota(jnp.int32, cls_preds.shape, 0)
    # torch.max returns the *first* index of the maximum -> min index among maxima
    first_max = jnp.min(jnp.where(cls_preds == max_score, c_idx, C),
                        axis=0, keepdims=True)                     # [1, tn]
    cls_f = (first_max + 1).astype(jnp.float32)

    if ADD_CENTERNESS:
        score = jnp.sqrt(max_score * cnt_pred)
    else:
        score = max_score

    # mask padded points (only exercised when the level is tiled/padded)
    tn = score.shape[-1]
    pt_idx = pl.program_id(1) * tn + jax.lax.broadcasted_iota(jnp.int32, (1, tn), 1)
    score = jnp.where(pt_idx < n_valid, score, -1.0)

    cx = coords_ref[0:1, :]                                        # [1, tn]
    cy = coords_ref[1:2, :]
    # _coords2boxes fused with ClipBoxes (clamp to [0, size-1])
    x1 = jnp.clip(cx - reg[0:1, :], 0.0, img_w - 1.0)
    y1 = jnp.clip(cy - reg[1:2, :], 0.0, img_h - 1.0)
    x2 = jnp.clip(cx + reg[2:3, :], 0.0, img_w - 1.0)
    y2 = jnp.clip(cy + reg[3:4, :], 0.0, img_h - 1.0)

    pad = jnp.zeros((2, tn), jnp.float32)
    det_ref[0] = jnp.concatenate([score, cls_f, x1, y1, x2, y2, pad], axis=0)


def fcos_level(x_l, w_lvl, b_lvl, w_head, b_head, coords_l, img_h, img_w,
               tn_max=8192):
    """One FPN level: x_l [B, Cin, M] -> (feat [B, 16, M] bf16, det [B, 8, M] f32)."""
    B, Cin, M = x_l.shape
    Cf = w_lvl.shape[0]
    Ch = w_head.shape[0]
    if M <= tn_max:
        tn, Mp = M, M
    else:
        tn = tn_max
        Mp = pl.cdiv(M, tn) * tn
        x_l = jnp.pad(x_l, ((0, 0), (0, 0), (0, Mp - M)))
        coords_l = jnp.pad(coords_l, ((0, 0), (0, Mp - M)))

    kernel = functools.partial(
        _fcos_level_kernel, num_classes=CLASS_NUM,
        img_h=float(img_h), img_w=float(img_w), n_valid=M)
    feat, det = pl.pallas_call(
        kernel,
        out_shape=(jax.ShapeDtypeStruct((B, Cf, Mp), jnp.bfloat16),
                   jax.ShapeDtypeStruct((B, 8, Mp), jnp.float32)),
        grid=(B, Mp // tn),
        in_specs=[
            pl.BlockSpec((1, Cin, tn), lambda bi, mi: (bi, 0, mi)),
            pl.BlockSpec((Cf, Cin), lambda bi, mi: (0, 0)),
            pl.BlockSpec((Cf, 1), lambda bi, mi: (0, 0)),
            pl.BlockSpec((Ch, Cf), lambda bi, mi: (0, 0)),
            pl.BlockSpec((Ch, 1), lambda bi, mi: (0, 0)),
            pl.BlockSpec((2, tn), lambda bi, mi: (0, mi)),
        ],
        out_specs=(
            pl.BlockSpec((1, Cf, tn), lambda bi, mi: (bi, 0, mi)),
            pl.BlockSpec((1, 8, tn), lambda bi, mi: (bi, 0, mi)),
        ),
        compiler_params=pltpu.CompilerParams(
            dimension_semantics=("parallel", "parallel")),
    )(x_l, w_lvl, b_lvl.reshape(Cf, 1), w_head, b_head.reshape(Ch, 1), coords_l)
    if Mp != M:
        feat = feat[:, :, :M]
        det = det[:, :, :M]
    return feat, det


# --------------------------- glue (plain JAX) --------------------------------
def coords_fmap2orig_t(h, w, stride):
    """Point coords in [2, h*w] layout (x row, y row), matching _reshape_cat_out order."""
    shifts_x = jnp.arange(0, w * stride, stride, dtype=jnp.float32)
    shifts_y = jnp.arange(0, h * stride, stride, dtype=jnp.float32)
    shift_y, shift_x = jnp.meshgrid(shifts_y, shifts_x, indexing="ij")
    coords = jnp.stack([shift_x.reshape(-1), shift_y.reshape(-1)], axis=0)
    return coords + stride // 2                                      # [2, h*w]


def downsample(x, h, w, stride):
    """Strided spatial downsample on [B, C, h*w] channels-first activations."""
    # TODO(synk): at real resolutions fold this into the consuming level kernel
    # (strided pl.ds loads / strided BlockSpec) to avoid the extra HBM pass;
    # trivial at toy sizes.
    B, C, _ = x.shape
    return x.reshape(B, C, h, w)[:, :, ::stride, ::stride].reshape(
        B, C, (h // stride) * (w // stride))


def init_params(key):
    ks = jax.random.split(key, 8)
    f = FPN_OUT_CHANNELS

    def w(k, cout, cin, dtype):   # conv weight in [Cout, Cin] (PyTorch-style) layout
        return (0.1 * jax.random.normal(k, (cout, cin), jnp.float32)).astype(dtype)

    return {
        # stem consumes the f32 image (3 ch); feature path is bf16 end-to-end.
        "w_stem": w(ks[0], f, 3, jnp.float32), "b_stem": jnp.zeros((f,), jnp.float32),
        "w_p3": w(ks[1], f, f, jnp.bfloat16), "b_p3": jnp.zeros((f,), jnp.float32),
        "w_p4": w(ks[2], f, f, jnp.bfloat16), "b_p4": jnp.zeros((f,), jnp.float32),
        "w_p5": w(ks[3], f, f, jnp.bfloat16), "b_p5": jnp.zeros((f,), jnp.float32),
        "w_cls": w(ks[4], CLASS_NUM, f, jnp.bfloat16),
        "b_cls": jnp.full((CLASS_NUM,), -math.log((1.0 - PRIOR) / PRIOR), jnp.float32),
        "w_cnt": w(ks[5], 1, f, jnp.bfloat16), "b_cnt": jnp.zeros((1,), jnp.float32),
        "w_reg": w(ks[6], 4, f, jnp.bfloat16), "b_reg": jnp.zeros((4,), jnp.float32),
    }


def fcos_detector_inference(x_nchw, params):
    B, Cin, H, W = x_nchw.shape

    # ---- synthetic FCOS body: stem conv (Pallas) at full resolution ----
    # NCHW is already channels-first: flatten spatial, no transpose needed.
    x = x_nchw.reshape(B, Cin, H * W)                                        # [B,3,HW]
    feat = conv1x1(x, params["w_stem"], params["b_stem"], "relu",
                   out_dtype=jnp.bfloat16)                                   # [B,16,HW]

    # shared head weights fused once: [C+5, 16] applied inside every level kernel
    w_head = jnp.concatenate(
        [params["w_cls"], params["w_cnt"], params["w_reg"]], axis=0)         # [C+5,16]
    b_head = jnp.concatenate(
        [params["b_cls"], params["b_cnt"], params["b_reg"]], axis=0)         # [C+5]

    # ---- per-level fused kernels: level conv + head matmul + detect epilogue ----
    h3, w3 = H // 4, W // 4
    p3, det3 = fcos_level(downsample(feat, H, W, 4),
                          params["w_p3"], params["b_p3"], w_head, b_head,
                          coords_fmap2orig_t(h3, w3, STRIDES[0]), H, W)
    h4, w4 = h3 // 2, w3 // 2
    p4, det4 = fcos_level(downsample(p3, h3, w3, 2),
                          params["w_p4"], params["b_p4"], w_head, b_head,
                          coords_fmap2orig_t(h4, w4, STRIDES[1]), H, W)
    h5, w5 = h4 // 2, w4 // 2
    _p5, det5 = fcos_level(downsample(p4, h4, w4, 2),
                           params["w_p5"], params["b_p5"], w_head, b_head,
                           coords_fmap2orig_t(h5, w5, STRIDES[2]), H, W)

    # ---- top-k over the packed lane-dense detect slabs ----
    # (_reshape_cat_out collapses to a lane-axis concatenation in this layout)
    det = jnp.concatenate([det3, det4, det5], axis=2)                        # [B,8,N]
    n_valid = h3 * w3 + h4 * w4 + h5 * w5
    max_num = min(MAX_DETECTION_BOXES_NUM, n_valid)

    scores_all = det[:, 0, :]                                                # [B,N]
    top_scores, top_ind = jax.lax.top_k(scores_all, max_num)
    top_classes = jnp.take_along_axis(det[:, 1, :], top_ind, axis=1).astype(jnp.int32)
    top_boxes = jnp.take_along_axis(det[:, 2:6, :], top_ind[:, None, :], axis=2)
    top_boxes = jnp.transpose(top_boxes, (0, 2, 1))                          # [B,max,4]

    # TODO(synk): DetectHead._post_process (score-threshold mask + per-class NMS)
    # is a data-dependent dynamic-shape loop with no clean Pallas equivalent.
    return top_scores, top_classes, top_boxes


if __name__ == "__main__":
    key = jax.random.PRNGKey(0)
    k_x, k_p = jax.random.split(key)
    x = jax.random.normal(k_x, (2, 3, 32, 32), jnp.float32)    # NCHW, like PyTorch
    params = init_params(k_p)

    run = jax.jit(fcos_detector_inference)
    scores, classes, boxes = run(x, params)
    jax.block_until_ready((scores, classes, boxes))

    assert scores.shape == (2, MAX_DETECTION_BOXES_NUM)
    assert classes.shape == (2, MAX_DETECTION_BOXES_NUM)
    assert boxes.shape == (2, MAX_DETECTION_BOXES_NUM, 4)
    print("KERNEL_OK")
</pallas_src>

<mosaic_0001>
module attributes {stable_mosaic.version = 11 : i64} {
  func.func @_conv1x1_kernel(%arg0: i32, %arg1: i32, %arg2: memref<1x3x1024xf32, #tpu.memory_space<vmem>>, %arg3: memref<16x3xf32, #tpu.memory_space<vmem>>, %arg4: memref<16x1xf32, #tpu.memory_space<vmem>>, %arg5: memref<1x16x1024xbf16, #tpu.memory_space<vmem>>) attributes {dimension_semantics = [#tpu.dimension_semantics<parallel>, #tpu.dimension_semantics<parallel>], iteration_bounds = array<i64: 2, 1>, scalar_prefetch = 0 : i64, scratch_operands = 0 : i64, tpu.core_type = #tpu.core_type<tc>, window_params = [{transform_indices = @transform_0, window_bounds = array<i64: 1, 3, 1024>}, {pipeline_mode = #tpu.pipeline_mode<synchronous>, transform_indices = @transform_1, window_bounds = array<i64: 16, 3>}, {pipeline_mode = #tpu.pipeline_mode<synchronous>, transform_indices = @transform_2, window_bounds = array<i64: 16, 1>}, {transform_indices = @transform_3, window_bounds = array<i64: 1, 16, 1024>}]} {
    %c0 = arith.constant 0 : index
    %c0_0 = arith.constant 0 : index
    %0 = vector.load %arg3[%c0, %c0_0] : memref<16x3xf32, #tpu.memory_space<vmem>>, vector<16x3xf32>
    %c0_1 = arith.constant 0 : index
    %c0_2 = arith.constant 0 : index
    %c0_3 = arith.constant 0 : index
    %1 = vector.load %arg2[%c0_1, %c0_2, %c0_3] : memref<1x3x1024xf32, #tpu.memory_space<vmem>>, vector<1x3x1024xf32>
    %2 = vector.shape_cast %1 : vector<1x3x1024xf32> to vector<3x1024xf32>
    %cst = arith.constant dense<0.000000e+00> : vector<16x1024xf32>
    %3 = tpu.matmul %0, %2, %cst {dimension_numbers = #tpu.dot_dimension_numbers<[1], [0], [0], [1], [0, 0, 1, 1], [], []>} : vector<16x3xf32>, vector<3x1024xf32>, vector<16x1024xf32> -> vector<16x1024xf32>
    %c0_4 = arith.constant 0 : index
    %c0_5 = arith.constant 0 : index
    %4 = vector.load %arg4[%c0_4, %c0_5] : memref<16x1xf32, #tpu.memory_space<vmem>>, vector<16x1xf32>
    %5 = vector.broadcast %4 : vector<16x1xf32> to vector<16x1024xf32>
    %6 = arith.addf %3, %5 : vector<16x1024xf32>
    %cst_6 = arith.constant 0.000000e+00 : f32
    %7 = vector.broadcast %cst_6 : f32 to vector<16x1024xf32>
    %8 = arith.maximumf %6, %7 : vector<16x1024xf32>
    %9 = arith.truncf %8 : vector<16x1024xf32> to vector<16x1024xbf16>
    %c0_7 = arith.constant 0 : index
    %c0_8 = arith.constant 0 : index
    %c0_9 = arith.constant 0 : index
    %10 = vector.load %arg5[%c0_7, %c0_8, %c0_9] : memref<1x16x1024xbf16, #tpu.memory_space<vmem>>, vector<1x16x1024xbf16>
    %11 = vector.shape_cast %10 : vector<1x16x1024xbf16> to vector<16x1024xbf16>
    %12 = vector.shape_cast %9 : vector<16x1024xbf16> to vector<1x16x1024xbf16>
    tpu.vector_store %arg5[%c0_7, %c0_8, %c0_9], %12 {strides = array<i32>} : memref<1x16x1024xbf16, #tpu.memory_space<vmem>>, vector<1x16x1024xbf16>,
    return
  }
  func.func @transform_0(%arg0: i32, %arg1: i32) -> (i32, i32, i32) {
    %c0_i32 = arith.constant 0 : i32
    %c0_i32_0 = arith.constant 0 : i32
    return %arg0, %c0_i32, %arg1 : i32, i32, i32
  }
  func.func @transform_1(%arg0: i32, %arg1: i32) -> (i32, i32) {
    %c0_i32 = arith.constant 0 : i32
    %c0_i32_0 = arith.constant 0 : i32
    %c0_i32_1 = arith.constant 0 : i32
    return %c0_i32, %c0_i32_0 : i32, i32
  }
  func.func @transform_2(%arg0: i32, %arg1: i32) -> (i32, i32) {
    %c0_i32 = arith.constant 0 : i32
    %c0_i32_0 = arith.constant 0 : i32
    %c0_i32_1 = arith.constant 0 : i32
    return %c0_i32, %c0_i32_0 : i32, i32
  }
  func.func @transform_3(%arg0: i32, %arg1: i32) -> (i32, i32, i32) {
    %c0_i32 = arith.constant 0 : i32
    %c0_i32_0 = arith.constant 0 : i32
    return %arg0, %c0_i32, %arg1 : i32, i32, i32
  }
}

module attributes {stable_mosaic.version = 11 : i64} {
  func.func @_fcos_level_kernel(%arg0: i32, %arg1: i32, %arg2: memref<1x16x64xbf16, #tpu.memory_space<vmem>>, %arg3: memref<16x16xbf16, #tpu.memory_space<vmem>>, %arg4: memref<16x1xf32, #tpu.memory_space<vmem>>, %arg5: memref<9x16xbf16, #tpu.memory_space<vmem>>, %arg6: memref<9x1xf32, #tpu.memory_space<vmem>>, %arg7: memref<2x64xf32, #tpu.memory_space<vmem>>, %arg8: memref<1x16x64xbf16, #tpu.memory_space<vmem>>, %arg9: memref<1x8x64xf32, #tpu.memory_space<vmem>>) attributes {dimension_semantics = [#tpu.dimension_semantics<parallel>, #tpu.dimension_semantics<parallel>], iteration_bounds = array<i64: 2, 1>, scalar_prefetch = 0 : i64, scratch_operands = 0 : i64, tpu.core_type = #tpu.core_type<tc>, window_params = [{transform_indices = @transform_0, window_bounds = array<i64: 1, 16, 64>}, {pipeline_mode = #tpu.pipeline_mode<synchronous>, transform_indices = @transform_1, window_bounds = array<i64: 16, 16>}, {pipeline_mode = #tpu.pipeline_mode<synchronous>, transform_indices = @transform_2, window_bounds = array<i64: 16, 1>}, {pipeline_mode = #tpu.pipeline_mode<synchronous>, transform_indices = @transform_3, window_bounds = array<i64: 9, 16>}, {pipeline_mode = #tpu.pipeline_mode<synchronous>, transform_indices = @transform_4, window_bounds = array<i64: 9, 1>}, {transform_indices = @transform_5, window_bounds = array<i64: 2, 64>}, {transform_indices = @transform_6, window_bounds = array<i64: 1, 16, 64>}, {transform_indices = @transform_7, window_bounds = array<i64: 1, 8, 64>}]} {
    %c0 = arith.constant 0 : index
    %c0_0 = arith.constant 0 : index
    %0 = vector.load %arg3[%c0, %c0_0] : memref<16x16xbf16, #tpu.memory_space<vmem>>, vector<16x16xbf16>
    %c0_1 = arith.constant 0 : index
    %c0_2 = arith.constant 0 : index
    %c0_3 = arith.constant 0 : index
    %1 = vector.load %arg2[%c0_1, %c0_2, %c0_3] : memref<1x16x64xbf16, #tpu.memory_space<vmem>>, vector<1x16x64xbf16>
    %2 = vector.shape_cast %1 : vector<1x16x64xbf16> to vector<16x64xbf16>
    %cst = arith.constant dense<0.000000e+00> : vector<16x64xf32>
    %3 = tpu.matmul %0, %2, %cst {dimension_numbers = #tpu.dot_dimension_numbers<[1], [0], [0], [1], [0, 0, 1, 1], [], []>} : vector<16x16xbf16>, vector<16x64xbf16>, vector<16x64xf32> -> vector<16x64xf32>
    %c0_4 = arith.constant 0 : index
    %c0_5 = arith.constant 0 : index
    %4 = vector.load %arg4[%c0_4, %c0_5] : memref<16x1xf32, #tpu.memory_space<vmem>>, vector<16x1xf32>
    %5 = vector.broadcast %4 : vector<16x1xf32> to vector<16x64xf32>
    %6 = arith.addf %3, %5 : vector<16x64xf32>
    %cst_6 = arith.constant 0.000000e+00 : f32
    %7 = vector.broadcast %cst_6 : f32 to vector<16x64xf32>
    %8 = arith.maximumf %6, %7 : vector<16x64xf32>
    %9 = arith.truncf %8 : vector<16x64xf32> to vector<16x64xbf16>
    %c0_7 = arith.constant 0 : index
    %c0_8 = arith.constant 0 : index
    %c0_9 = arith.constant 0 : index
    %10 = vector.load %arg8[%c0_7, %c0_8, %c0_9] : memref<1x16x64xbf16, #tpu.memory_space<vmem>>, vector<1x16x64xbf16>
    %11 = vector.shape_cast %10 : vector<1x16x64xbf16> to vector<16x64xbf16>
    %12 = vector.shape_cast %9 : vector<16x64xbf16> to vector<1x16x64xbf16>
    tpu.vector_store %arg8[%c0_7, %c0_8, %c0_9], %12 {strides = array<i32>} : memref<1x16x64xbf16, #tpu.memory_space<vmem>>, vector<1x16x64xbf16>,
    %c0_10 = arith.constant 0 : index
    %c0_11 = arith.constant 0 : index
    %13 = vector.load %arg5[%c0_10, %c0_11] : memref<9x16xbf16, #tpu.memory_space<vmem>>, vector<9x16xbf16>
    %cst_12 = arith.constant dense<0.000000e+00> : vector<9x64xf32>
    %14 = tpu.matmul %13, %9, %cst_12 {dimension_numbers = #tpu.dot_dimension_numbers<[1], [0], [0], [1], [0, 0, 1, 1], [], []>} : vector<9x16xbf16>, vector<16x64xbf16>, vector<9x64xf32> -> vector<9x64xf32>
    %c0_13 = arith.constant 0 : index
    %c0_14 = arith.constant 0 : index
    %15 = vector.load %arg6[%c0_13, %c0_14] : memref<9x1xf32, #tpu.memory_space<vmem>>, vector<9x1xf32>
    %16 = vector.broadcast %15 : vector<9x1xf32> to vector<9x64xf32>
    %17 = arith.addf %14, %16 : vector<9x64xf32>
    %18 = vector.extract_strided_slice %17 {offsets = [0, 0], sizes = [4, 64], strides = [1, 1]} : vector<9x64xf32> to vector<4x64xf32>
    %19 = arith.negf %18 : vector<4x64xf32>
    %20 = math.exp %19 : vector<4x64xf32>
    %cst_15 = arith.constant 1.000000e+00 : f32
    %21 = vector.broadcast %cst_15 : f32 to vector<4x64xf32>
    %22 = arith.addf %21, %20 : vector<4x64xf32>
    %23 = arith.divf %21, %22 : vector<4x64xf32>
    %24 = vector.extract_strided_slice %17 {offsets = [4, 0], sizes = [1, 64], strides = [1, 1]} : vector<9x64xf32> to vector<1x64xf32>
    %25 = arith.negf %24 : vector<1x64xf32>
    %26 = math.exp %25 : vector<1x64xf32>
    %cst_16 = arith.constant 1.000000e+00 : f32
    %27 = vector.broadcast %cst_16 : f32 to vector<1x64xf32>
    %28 = arith.addf %27, %26 : vector<1x64xf32>
    %29 = arith.divf %27, %28 : vector<1x64xf32>
    %30 = vector.extract_strided_slice %17 {offsets = [5, 0], sizes = [4, 64], strides = [1, 1]} : vector<9x64xf32> to vector<4x64xf32>
    %31 = math.exp %30 : vector<4x64xf32>
    %cst_17 = arith.constant dense<0xFF800000> : vector<64xf32>
    %32 = vector.multi_reduction <maximumf>, %23, %cst_17 [0] : vector<4x64xf32> to vector<64xf32>
    %33 = vector.shape_cast %32 : vector<64xf32> to vector<1x64xf32>
    %34 = tpu.iota {dimensions = array<i32: 0>} : vector<4x64xi32>
    %35 = vector.broadcast %33 : vector<1x64xf32> to vector<4x64xf32>
    %36 = arith.cmpf oeq, %23, %35 : vector<4x64xf32>
    %c4_i32 = arith.constant 4 : i32
    %37 = vector.broadcast %c4_i32 : i32 to vector<4x64xi32>
    %38 = arith.select %36, %34, %37 : vector<4x64xi1>, vector<4x64xi32>
    %cst_18 = arith.constant dense<2147483647> : vector<64xi32>
    %39 = vector.multi_reduction <minsi>, %38, %cst_18 [0] : vector<4x64xi32> to vector<64xi32>
    %40 = vector.shape_cast %39 : vector<64xi32> to vector<1x64xi32>
    %c1_i32 = arith.constant 1 : i32
    %41 = vector.broadcast %c1_i32 : i32 to vector<1x64xi32>
    %42 = arith.addi %40, %41 : vector<1x64xi32>
    %43 = arith.sitofp %42 : vector<1x64xi32> to vector<1x64xf32>
    %44 = arith.mulf %33, %29 : vector<1x64xf32>
    %45 = math.sqrt %44 : vector<1x64xf32>
    %c64_i32 = arith.constant 64 : i32
    %46 = arith.muli %arg1, %c64_i32 : i32
    %47 = tpu.iota {dimensions = array<i32: 1>} : vector<1x64xi32>
    %48 = vector.broadcast %46 : i32 to vector<1x64xi32>
    %49 = arith.addi %48, %47 : vector<1x64xi32>
    %c64_i32_19 = arith.constant 64 : i32
    %50 = vector.broadcast %c64_i32_19 : i32 to vector<1x64xi32>
    %51 = arith.cmpi slt, %49, %50 : vector<1x64xi32>
    %cst_20 = arith.constant -1.000000e+00 : f32
    %52 = vector.broadcast %cst_20 : f32 to vector<1x64xf32>
    %53 = arith.select %51, %45, %52 : vector<1x64xi1>, vector<1x64xf32>
    %c0_21 = arith.constant 0 : index
    %c0_22 = arith.constant 0 : index
    %54 = vector.load %arg7[%c0_21, %c0_22] : memref<2x64xf32, #tpu.memory_space<vmem>>, vector<1x64xf32>
    %c1 = arith.constant 1 : index
    %c0_23 = arith.constant 0 : index
    %55 = vector.load %arg7[%c1, %c0_23] : memref<2x64xf32, #tpu.memory_space<vmem>>, vector<1x64xf32>
    %56 = vector.extract_strided_slice %31 {offsets = [0, 0], sizes = [1, 64], strides = [1, 1]} : vector<4x64xf32> to vector<1x64xf32>
    %57 = arith.subf %54, %56 : vector<1x64xf32>
    %cst_24 = arith.constant 0.000000e+00 : f32
    %cst_25 = arith.constant 3.100000e+01 : f32
    %58 = vector.broadcast %cst_24 : f32 to vector<1x64xf32>
    %59 = arith.maximumf %58, %57 : vector<1x64xf32>
    %60 = vector.broadcast %cst_25 : f32 to vector<1x64xf32>
    %61 = arith.minimumf %60, %59 : vector<1x64xf32>
    %62 = vector.extract_strided_slice %31 {offsets = [1, 0], sizes = [1, 64], strides = [1, 1]} : vector<4x64xf32> to vector<1x64xf32>
    %63 = arith.subf %55, %62 : vector<1x64xf32>
    %cst_26 = arith.constant 0.000000e+00 : f32
    %cst_27 = arith.constant 3.100000e+01 : f32
    %64 = vector.broadcast %cst_26 : f32 to vector<1x64xf32>
    %65 = arith.maximumf %64, %63 : vector<1x64xf32>
    %66 = vector.broadcast %cst_27 : f32 to vector<1x64xf32>
    %67 = arith.minimumf %66, %65 : vector<1x64xf32>
    %68 = vector.extract_strided_slice %31 {offsets = [2, 0], sizes = [1, 64], strides = [1, 1]} : vector<4x64xf32> to vector<1x64xf32>
    %69 = arith.addf %54, %68 : vector<1x64xf32>
    %cst_28 = arith.constant 0.000000e+00 : f32
    %cst_29 = arith.constant 3.100000e+01 : f32
    %70 = vector.broadcast %cst_28 : f32 to vector<1x64xf32>
    %71 = arith.maximumf %70, %69 : vector<1x64xf32>
    %72 = vector.broadcast %cst_29 : f32 to vector<1x64xf32>
    %73 = arith.minimumf %72, %71 : vector<1x64xf32>
    %74 = vector.extract_strided_slice %31 {offsets = [3, 0], sizes = [1, 64], strides = [1, 1]} : vector<4x64xf32> to vector<1x64xf32>
    %75 = arith.addf %55, %74 : vector<1x64xf32>
    %cst_30 = arith.constant 0.000000e+00 : f32
    %cst_31 = arith.constant 3.100000e+01 : f32
    %76 = vector.broadcast %cst_30 : f32 to vector<1x64xf32>
    %77 = arith.maximumf %76, %75 : vector<1x64xf32>
    %78 = vector.broadcast %cst_31 : f32 to vector<1x64xf32>
    %79 = arith.minimumf %78, %77 : vector<1x64xf32>
    %cst_32 = arith.constant 0.000000e+00 : f32
    %80 = vector.broadcast %cst_32 : f32 to vector<2x64xf32>
    %81 = tpu.concatenate %53, %43, %61, %67, %73, %79, %80 in 0 : vector<1x64xf32>, vector<1x64xf32>, vector<1x64xf32>, vector<1x64xf32>, vector<1x64xf32>, vector<1x64xf32>, vector<2x64xf32> -> vector<8x64xf32>
    %c0_33 = arith.constant 0 : index
    %c0_34 = arith.constant 0 : index
    %c0_35 = arith.constant 0 : index
    %82 = vector.load %arg9[%c0_33, %c0_34, %c0_35] : memref<1x8x64xf32, #tpu.memory_space<vmem>>, vector<1x8x64xf32>
    %83 = vector.shape_cast %82 : vector<1x8x64xf32> to vector<8x64xf32>
    %84 = vector.shape_cast %81 : vector<8x64xf32> to vector<1x8x64xf32>
    tpu.vector_store %arg9[%c0_33, %c0_34, %c0_35], %84 {strides = array<i32>} : memref<1x8x64xf32, #tpu.memory_space<vmem>>, vector<1x8x64xf32>,
    return
  }
  func.func @transform_0(%arg0: i32, %arg1: i32) -> (i32, i32, i32) {
    %c0_i32 = arith.constant 0 : i32
    %c0_i32_0 = arith.constant 0 : i32
    return %arg0, %c0_i32, %arg1 : i32, i32, i32
  }
  func.func @transform_1(%arg0: i32, %arg1: i32) -> (i32, i32) {
    %c0_i32 = arith.constant 0 : i32
    %c0_i32_0 = arith.constant 0 : i32
    %c0_i32_1 = arith.constant 0 : i32
    return %c0_i32, %c0_i32_0 : i32, i32
  }
  func.func @transform_2(%arg0: i32, %arg1: i32) -> (i32, i32) {
    %c0_i32 = arith.constant 0 : i32
    %c0_i32_0 = arith.constant 0 : i32
    %c0_i32_1 = arith.constant 0 : i32
    return %c0_i32, %c0_i32_0 : i32, i32
  }
  func.func @transform_3(%arg0: i32, %arg1: i32) -> (i32, i32) {
    %c0_i32 = arith.constant 0 : i32
    %c0_i32_0 = arith.constant 0 : i32
    %c0_i32_1 = arith.constant 0 : i32
    return %c0_i32, %c0_i32_0 : i32, i32
  }
  func.func @transform_4(%arg0: i32, %arg1: i32) -> (i32, i32) {
    %c0_i32 = arith.constant 0 : i32
    %c0_i32_0 = arith.constant 0 : i32
    %c0_i32_1 = arith.constant 0 : i32
    return %c0_i32, %c0_i32_0 : i32, i32
  }
  func.func @transform_5(%arg0: i32, %arg1: i32) -> (i32, i32) {
    %c0_i32 = arith.constant 0 : i32
    %c0_i32_0 = arith.constant 0 : i32
    return %c0_i32, %arg1 : i32, i32
  }
  func.func @transform_6(%arg0: i32, %arg1: i32) -> (i32, i32, i32) {
    %c0_i32 = arith.constant 0 : i32
    %c0_i32_0 = arith.constant 0 : i32
    return %arg0, %c0_i32, %arg1 : i32, i32, i32
  }
  func.func @transform_7(%arg0: i32, %arg1: i32) -> (i32, i32, i32) {
    %c0_i32 = arith.constant 0 : i32
    %c0_i32_0 = arith.constant 0 : i32
    return %arg0, %c0_i32, %arg1 : i32, i32, i32
  }
}

module attributes {stable_mosaic.version = 11 : i64} {
  func.func @_fcos_level_kernel(%arg0: i32, %arg1: i32, %arg2: memref<1x16x16xbf16, #tpu.memory_space<vmem>>, %arg3: memref<16x16xbf16, #tpu.memory_space<vmem>>, %arg4: memref<16x1xf32, #tpu.memory_space<vmem>>, %arg5: memref<9x16xbf16, #tpu.memory_space<vmem>>, %arg6: memref<9x1xf32, #tpu.memory_space<vmem>>, %arg7: memref<2x16xf32, #tpu.memory_space<vmem>>, %arg8: memref<1x16x16xbf16, #tpu.memory_space<vmem>>, %arg9: memref<1x8x16xf32, #tpu.memory_space<vmem>>) attributes {dimension_semantics = [#tpu.dimension_semantics<parallel>, #tpu.dimension_semantics<parallel>], iteration_bounds = array<i64: 2, 1>, scalar_prefetch = 0 : i64, scratch_operands = 0 : i64, tpu.core_type = #tpu.core_type<tc>, window_params = [{transform_indices = @transform_0, window_bounds = array<i64: 1, 16, 16>}, {pipeline_mode = #tpu.pipeline_mode<synchronous>, transform_indices = @transform_1, window_bounds = array<i64: 16, 16>}, {pipeline_mode = #tpu.pipeline_mode<synchronous>, transform_indices = @transform_2, window_bounds = array<i64: 16, 1>}, {pipeline_mode = #tpu.pipeline_mode<synchronous>, transform_indices = @transform_3, window_bounds = array<i64: 9, 16>}, {pipeline_mode = #tpu.pipeline_mode<synchronous>, transform_indices = @transform_4, window_bounds = array<i64: 9, 1>}, {transform_indices = @transform_5, window_bounds = array<i64: 2, 16>}, {transform_indices = @transform_6, window_bounds = array<i64: 1, 16, 16>}, {transform_indices = @transform_7, window_bounds = array<i64: 1, 8, 16>}]} {
    %c0 = arith.constant 0 : index
    %c0_0 = arith.constant 0 : index
    %0 = vector.load %arg3[%c0, %c0_0] : memref<16x16xbf16, #tpu.memory_space<vmem>>, vector<16x16xbf16>
    %c0_1 = arith.constant 0 : index
    %c0_2 = arith.constant 0 : index
    %c0_3 = arith.constant 0 : index
    %1 = vector.load %arg2[%c0_1, %c0_2, %c0_3] : memref<1x16x16xbf16, #tpu.memory_space<vmem>>, vector<1x16x16xbf16>
    %2 = vector.shape_cast %1 : vector<1x16x16xbf16> to vector<16x16xbf16>
    %cst = arith.constant dense<0.000000e+00> : vector<16x16xf32>
    %3 = tpu.matmul %0, %2, %cst {dimension_numbers = #tpu.dot_dimension_numbers<[1], [0], [0], [1], [0, 0, 1, 1], [], []>} : vector<16x16xbf16>, vector<16x16xbf16>, vector<16x16xf32> -> vector<16x16xf32>
    %c0_4 = arith.constant 0 : index
    %c0_5 = arith.constant 0 : index
    %4 = vector.load %arg4[%c0_4, %c0_5] : memref<16x1xf32, #tpu.memory_space<vmem>>, vector<16x1xf32>
    %5 = vector.broadcast %4 : vector<16x1xf32> to vector<16x16xf32>
    %6 = arith.addf %3, %5 : vector<16x16xf32>
    %cst_6 = arith.constant 0.000000e+00 : f32
    %7 = vector.broadcast %cst_6 : f32 to vector<16x16xf32>
    %8 = arith.maximumf %6, %7 : vector<16x16xf32>
    %9 = arith.truncf %8 : vector<16x16xf32> to vector<16x16xbf16>
    %c0_7 = arith.constant 0 : index
    %c0_8 = arith.constant 0 : index
    %c0_9 = arith.constant 0 : index
    %10 = vector.load %arg8[%c0_7, %c0_8, %c0_9] : memref<1x16x16xbf16, #tpu.memory_space<vmem>>, vector<1x16x16xbf16>
    %11 = vector.shape_cast %10 : vector<1x16x16xbf16> to vector<16x16xbf16>
    %12 = vector.shape_cast %9 : vector<16x16xbf16> to vector<1x16x16xbf16>
    tpu.vector_store %arg8[%c0_7, %c0_8, %c0_9], %12 {strides = array<i32>} : memref<1x16x16xbf16, #tpu.memory_space<vmem>>, vector<1x16x16xbf16>,
    %c0_10 = arith.constant 0 : index
    %c0_11 = arith.constant 0 : index
    %13 = vector.load %arg5[%c0_10, %c0_11] : memref<9x16xbf16, #tpu.memory_space<vmem>>, vector<9x16xbf16>
    %cst_12 = arith.constant dense<0.000000e+00> : vector<9x16xf32>
    %14 = tpu.matmul %13, %9, %cst_12 {dimension_numbers = #tpu.dot_dimension_numbers<[1], [0], [0], [1], [0, 0, 1, 1], [], []>} : vector<9x16xbf16>, vector<16x16xbf16>, vector<9x16xf32> -> vector<9x16xf32>
    %c0_13 = arith.constant 0 : index
    %c0_14 = arith.constant 0 : index
    %15 = vector.load %arg6[%c0_13, %c0_14] : memref<9x1xf32, #tpu.memory_space<vmem>>, vector<9x1xf32>
    %16 = vector.broadcast %15 : vector<9x1xf32> to vector<9x16xf32>
    %17 = arith.addf %14, %16 : vector<9x16xf32>
    %18 = vector.extract_strided_slice %17 {offsets = [0, 0], sizes = [4, 16], strides = [1, 1]} : vector<9x16xf32> to vector<4x16xf32>
    %19 = arith.negf %18 : vector<4x16xf32>
    %20 = math.exp %19 : vector<4x16xf32>
    %cst_15 = arith.constant 1.000000e+00 : f32
    %21 = vector.broadcast %cst_15 : f32 to vector<4x16xf32>
    %22 = arith.addf %21, %20 : vector<4x16xf32>
    %23 = arith.divf %21, %22 : vector<4x16xf32>
    %24 = vector.extract_strided_slice %17 {offsets = [4, 0], sizes = [1, 16], strides = [1, 1]} : vector<9x16xf32> to vector<1x16xf32>
    %25 = arith.negf %24 : vector<1x16xf32>
    %26 = math.exp %25 : vector<1x16xf32>
    %cst_16 = arith.constant 1.000000e+00 : f32
    %27 = vector.broadcast %cst_16 : f32 to vector<1x16xf32>
    %28 = arith.addf %27, %26 : vector<1x16xf32>
    %29 = arith.divf %27, %28 : vector<1x16xf32>
    %30 = vector.extract_strided_slice %17 {offsets = [5, 0], sizes = [4, 16], strides = [1, 1]} : vector<9x16xf32> to vector<4x16xf32>
    %31 = math.exp %30 : vector<4x16xf32>
    %cst_17 = arith.constant dense<0xFF800000> : vector<16xf32>
    %32 = vector.multi_reduction <maximumf>, %23, %cst_17 [0] : vector<4x16xf32> to vector<16xf32>
    %33 = vector.shape_cast %32 : vector<16xf32> to vector<1x16xf32>
    %34 = tpu.iota {dimensions = array<i32: 0>} : vector<4x16xi32>
    %35 = vector.broadcast %33 : vector<1x16xf32> to vector<4x16xf32>
    %36 = arith.cmpf oeq, %23, %35 : vector<4x16xf32>
    %c4_i32 = arith.constant 4 : i32
    %37 = vector.broadcast %c4_i32 : i32 to vector<4x16xi32>
    %38 = arith.select %36, %34, %37 : vector<4x16xi1>, vector<4x16xi32>
    %cst_18 = arith.constant dense<2147483647> : vector<16xi32>
    %39 = vector.multi_reduction <minsi>, %38, %cst_18 [0] : vector<4x16xi32> to vector<16xi32>
    %40 = vector.shape_cast %39 : vector<16xi32> to vector<1x16xi32>
    %c1_i32 = arith.constant 1 : i32
    %41 = vector.broadcast %c1_i32 : i32 to vector<1x16xi32>
    %42 = arith.addi %40, %41 : vector<1x16xi32>
    %43 = arith.sitofp %42 : vector<1x16xi32> to vector<1x16xf32>
    %44 = arith.mulf %33, %29 : vector<1x16xf32>
    %45 = math.sqrt %44 : vector<1x16xf32>
    %c16_i32 = arith.constant 16 : i32
    %46 = arith.muli %arg1, %c16_i32 : i32
    %47 = tpu.iota {dimensions = array<i32: 1>} : vector<1x16xi32>
    %48 = vector.broadcast %46 : i32 to vector<1x16xi32>
    %49 = arith.addi %48, %47 : vector<1x16xi32>
    %c16_i32_19 = arith.constant 16 : i32
    %50 = vector.broadcast %c16_i32_19 : i32 to vector<1x16xi32>
    %51 = arith.cmpi slt, %49, %50 : vector<1x16xi32>
    %cst_20 = arith.constant -1.000000e+00 : f32
    %52 = vector.broadcast %cst_20 : f32 to vector<1x16xf32>
    %53 = arith.select %51, %45, %52 : vector<1x16xi1>, vector<1x16xf32>
    %c0_21 = arith.constant 0 : index
    %c0_22 = arith.constant 0 : index
    %54 = vector.load %arg7[%c0_21, %c0_22] : memref<2x16xf32, #tpu.memory_space<vmem>>, vector<1x16xf32>
    %c1 = arith.constant 1 : index
    %c0_23 = arith.constant 0 : index
    %55 = vector.load %arg7[%c1, %c0_23] : memref<2x16xf32, #tpu.memory_space<vmem>>, vector<1x16xf32>
    %56 = vector.extract_strided_slice %31 {offsets = [0, 0], sizes = [1, 16], strides = [1, 1]} : vector<4x16xf32> to vector<1x16xf32>
    %57 = arith.subf %54, %56 : vector<1x16xf32>
    %cst_24 = arith.constant 0.000000e+00 : f32
    %cst_25 = arith.constant 3.100000e+01 : f32
    %58 = vector.broadcast %cst_24 : f32 to vector<1x16xf32>
    %59 = arith.maximumf %58, %57 : vector<1x16xf32>
    %60 = vector.broadcast %cst_25 : f32 to vector<1x16xf32>
    %61 = arith.minimumf %60, %59 : vector<1x16xf32>
    %62 = vector.extract_strided_slice %31 {offsets = [1, 0], sizes = [1, 16], strides = [1, 1]} : vector<4x16xf32> to vector<1x16xf32>
    %63 = arith.subf %55, %62 : vector<1x16xf32>
    %cst_26 = arith.constant 0.000000e+00 : f32
    %cst_27 = arith.constant 3.100000e+01 : f32
    %64 = vector.broadcast %cst_26 : f32 to vector<1x16xf32>
    %65 = arith.maximumf %64, %63 : vector<1x16xf32>
    %66 = vector.broadcast %cst_27 : f32 to vector<1x16xf32>
    %67 = arith.minimumf %66, %65 : vector<1x16xf32>
    %68 = vector.extract_strided_slice %31 {offsets = [2, 0], sizes = [1, 16], strides = [1, 1]} : vector<4x16xf32> to vector<1x16xf32>
    %69 = arith.addf %54, %68 : vector<1x16xf32>
    %cst_28 = arith.constant 0.000000e+00 : f32
    %cst_29 = arith.constant 3.100000e+01 : f32
    %70 = vector.broadcast %cst_28 : f32 to vector<1x16xf32>
    %71 = arith.maximumf %70, %69 : vector<1x16xf32>
    %72 = vector.broadcast %cst_29 : f32 to vector<1x16xf32>
    %73 = arith.minimumf %72, %71 : vector<1x16xf32>
    %74 = vector.extract_strided_slice %31 {offsets = [3, 0], sizes = [1, 16], strides = [1, 1]} : vector<4x16xf32> to vector<1x16xf32>
    %75 = arith.addf %55, %74 : vector<1x16xf32>
    %cst_30 = arith.constant 0.000000e+00 : f32
    %cst_31 = arith.constant 3.100000e+01 : f32
    %76 = vector.broadcast %cst_30 : f32 to vector<1x16xf32>
    %77 = arith.maximumf %76, %75 : vector<1x16xf32>
    %78 = vector.broadcast %cst_31 : f32 to vector<1x16xf32>
    %79 = arith.minimumf %78, %77 : vector<1x16xf32>
    %cst_32 = arith.constant 0.000000e+00 : f32
    %80 = vector.broadcast %cst_32 : f32 to vector<2x16xf32>
    %81 = tpu.concatenate %53, %43, %61, %67, %73, %79, %80 in 0 : vector<1x16xf32>, vector<1x16xf32>, vector<1x16xf32>, vector<1x16xf32>, vector<1x16xf32>, vector<1x16xf32>, vector<2x16xf32> -> vector<8x16xf32>
    %c0_33 = arith.constant 0 : index
    %c0_34 = arith.constant 0 : index
    %c0_35 = arith.constant 0 : index
    %82 = vector.load %arg9[%c0_33, %c0_34, %c0_35] : memref<1x8x16xf32, #tpu.memory_space<vmem>>, vector<1x8x16xf32>
    %83 = vector.shape_cast %82 : vector<1x8x16xf32> to vector<8x16xf32>
    %84 = vector.shape_cast %81 : vector<8x16xf32> to vector<1x8x16xf32>
    tpu.vector_store %arg9[%c0_33, %c0_34, %c0_35], %84 {strides = array<i32>} : memref<1x8x16xf32, #tpu.memory_space<vmem>>, vector<1x8x16xf32>,
    return
  }
  func.func @transform_0(%arg0: i32, %arg1: i32) -> (i32, i32, i32) {
    %c0_i32 = arith.constant 0 : i32
    %c0_i32_0 = arith.constant 0 : i32
    return %arg0, %c0_i32, %arg1 : i32, i32, i32
  }
  func.func @transform_1(%arg0: i32, %arg1: i32) -> (i32, i32) {
    %c0_i32 = arith.constant 0 : i32
    %c0_i32_0 = arith.constant 0 : i32
    %c0_i32_1 = arith.constant 0 : i32
    return %c0_i32, %c0_i32_0 : i32, i32
  }
  func.func @transform_2(%arg0: i32, %arg1: i32) -> (i32, i32) {
    %c0_i32 = arith.constant 0 : i32
    %c0_i32_0 = arith.constant 0 : i32
    %c0_i32_1 = arith.constant 0 : i32
    return %c0_i32, %c0_i32_0 : i32, i32
  }
  func.func @transform_3(%arg0: i32, %arg1: i32) -> (i32, i32) {
    %c0_i32 = arith.constant 0 : i32
    %c0_i32_0 = arith.constant 0 : i32
    %c0_i32_1 = arith.constant 0 : i32
    return %c0_i32, %c0_i32_0 : i32, i32
  }
  func.func @transform_4(%arg0: i32, %arg1: i32) -> (i32, i32) {
    %c0_i32 = arith.constant 0 : i32
    %c0_i32_0 = arith.constant 0 : i32
    %c0_i32_1 = arith.constant 0 : i32
    return %c0_i32, %c0_i32_0 : i32, i32
  }
  func.func @transform_5(%arg0: i32, %arg1: i32) -> (i32, i32) {
    %c0_i32 = arith.constant 0 : i32
    %c0_i32_0 = arith.constant 0 : i32
    return %c0_i32, %arg1 : i32, i32
  }
  func.func @transform_6(%arg0: i32, %arg1: i32) -> (i32, i32, i32) {
    %c0_i32 = arith.constant 0 : i32
    %c0_i32_0 = arith.constant 0 : i32
    return %arg0, %c0_i32, %arg1 : i32, i32, i32
  }
  func.func @transform_7(%arg0: i32, %arg1: i32) -> (i32, i32, i32) {
    %c0_i32 = arith.constant 0 : i32
    %c0_i32_0 = arith.constant 0 : i32
    return %arg0, %c0_i32, %arg1 : i32, i32, i32
  }
}

module attributes {stable_mosaic.version = 11 : i64} {
  func.func @_fcos_level_kernel(%arg0: i32, %arg1: i32, %arg2: memref<1x16x4xbf16, #tpu.memory_space<vmem>>, %arg3: memref<16x16xbf16, #tpu.memory_space<vmem>>, %arg4: memref<16x1xf32, #tpu.memory_space<vmem>>, %arg5: memref<9x16xbf16, #tpu.memory_space<vmem>>, %arg6: memref<9x1xf32, #tpu.memory_space<vmem>>, %arg7: memref<2x4xf32, #tpu.memory_space<vmem>>, %arg8: memref<1x16x4xbf16, #tpu.memory_space<vmem>>, %arg9: memref<1x8x4xf32, #tpu.memory_space<vmem>>) attributes {dimension_semantics = [#tpu.dimension_semantics<parallel>, #tpu.dimension_semantics<parallel>], iteration_bounds = array<i64: 2, 1>, scalar_prefetch = 0 : i64, scratch_operands = 0 : i64, tpu.core_type = #tpu.core_type<tc>, window_params = [{transform_indices = @transform_0, window_bounds = array<i64: 1, 16, 4>}, {pipeline_mode = #tpu.pipeline_mode<synchronous>, transform_indices = @transform_1, window_bounds = array<i64: 16, 16>}, {pipeline_mode = #tpu.pipeline_mode<synchronous>, transform_indices = @transform_2, window_bounds = array<i64: 16, 1>}, {pipeline_mode = #tpu.pipeline_mode<synchronous>, transform_indices = @transform_3, window_bounds = array<i64: 9, 16>}, {pipeline_mode = #tpu.pipeline_mode<synchronous>, transform_indices = @transform_4, window_bounds = array<i64: 9, 1>}, {transform_indices = @transform_5, window_bounds = array<i64: 2, 4>}, {transform_indices = @transform_6, window_bounds = array<i64: 1, 16, 4>}, {transform_indices = @transform_7, window_bounds = array<i64: 1, 8, 4>}]} {
    %c0 = arith.constant 0 : index
    %c0_0 = arith.constant 0 : index
    %0 = vector.load %arg3[%c0, %c0_0] : memref<16x16xbf16, #tpu.memory_space<vmem>>, vector<16x16xbf16>
    %c0_1 = arith.constant 0 : index
    %c0_2 = arith.constant 0 : index
    %c0_3 = arith.constant 0 : index
    %1 = vector.load %arg2[%c0_1, %c0_2, %c0_3] : memref<1x16x4xbf16, #tpu.memory_space<vmem>>, vector<1x16x4xbf16>
    %2 = vector.shape_cast %1 : vector<1x16x4xbf16> to vector<16x4xbf16>
    %cst = arith.constant dense<0.000000e+00> : vector<16x4xf32>
    %3 = tpu.matmul %0, %2, %cst {dimension_numbers = #tpu.dot_dimension_numbers<[1], [0], [0], [1], [0, 0, 1, 1], [], []>} : vector<16x16xbf16>, vector<16x4xbf16>, vector<16x4xf32> -> vector<16x4xf32>
    %c0_4 = arith.constant 0 : index
    %c0_5 = arith.constant 0 : index
    %4 = vector.load %arg4[%c0_4, %c0_5] : memref<16x1xf32, #tpu.memory_space<vmem>>, vector<16x1xf32>
    %5 = vector.broadcast %4 : vector<16x1xf32> to vector<16x4xf32>
    %6 = arith.addf %3, %5 : vector<16x4xf32>
    %cst_6 = arith.constant 0.000000e+00 : f32
    %7 = vector.broadcast %cst_6 : f32 to vector<16x4xf32>
    %8 = arith.maximumf %6, %7 : vector<16x4xf32>
    %9 = arith.truncf %8 : vector<16x4xf32> to vector<16x4xbf16>
    %c0_7 = arith.constant 0 : index
    %c0_8 = arith.constant 0 : index
    %c0_9 = arith.constant 0 : index
    %10 = vector.load %arg8[%c0_7, %c0_8, %c0_9] : memref<1x16x4xbf16, #tpu.memory_space<vmem>>, vector<1x16x4xbf16>
    %11 = vector.shape_cast %10 : vector<1x16x4xbf16> to vector<16x4xbf16>
    %12 = vector.shape_cast %9 : vector<16x4xbf16> to vector<1x16x4xbf16>
    tpu.vector_store %arg8[%c0_7, %c0_8, %c0_9], %12 {strides = array<i32>} : memref<1x16x4xbf16, #tpu.memory_space<vmem>>, vector<1x16x4xbf16>,
    %c0_10 = arith.constant 0 : index
    %c0_11 = arith.constant 0 : index
    %13 = vector.load %arg5[%c0_10, %c0_11] : memref<9x16xbf16, #tpu.memory_space<vmem>>, vector<9x16xbf16>
    %cst_12 = arith.constant dense<0.000000e+00> : vector<9x4xf32>
    %14 = tpu.matmul %13, %9, %cst_12 {dimension_numbers = #tpu.dot_dimension_numbers<[1], [0], [0], [1], [0, 0, 1, 1], [], []>} : vector<9x16xbf16>, vector<16x4xbf16>, vector<9x4xf32> -> vector<9x4xf32>
    %c0_13 = arith.constant 0 : index
    %c0_14 = arith.constant 0 : index
    %15 = vector.load %arg6[%c0_13, %c0_14] : memref<9x1xf32, #tpu.memory_space<vmem>>, vector<9x1xf32>
    %16 = vector.broadcast %15 : vector<9x1xf32> to vector<9x4xf32>
    %17 = arith.addf %14, %16 : vector<9x4xf32>
    %18 = vector.extract_strided_slice %17 {offsets = [0, 0], sizes = [4, 4], strides = [1, 1]} : vector<9x4xf32> to vector<4x4xf32>
    %19 = arith.negf %18 : vector<4x4xf32>
    %20 = math.exp %19 : vector<4x4xf32>
    %cst_15 = arith.constant 1.000000e+00 : f32
    %21 = vector.broadcast %cst_15 : f32 to vector<4x4xf32>
    %22 = arith.addf %21, %20 : vector<4x4xf32>
    %23 = arith.divf %21, %22 : vector<4x4xf32>
    %24 = vector.extract_strided_slice %17 {offsets = [4, 0], sizes = [1, 4], strides = [1, 1]} : vector<9x4xf32> to vector<1x4xf32>
    %25 = arith.negf %24 : vector<1x4xf32>
    %26 = math.exp %25 : vector<1x4xf32>
    %cst_16 = arith.constant 1.000000e+00 : f32
    %27 = vector.broadcast %cst_16 : f32 to vector<1x4xf32>
    %28 = arith.addf %27, %26 : vector<1x4xf32>
    %29 = arith.divf %27, %28 : vector<1x4xf32>
    %30 = vector.extract_strided_slice %17 {offsets = [5, 0], sizes = [4, 4], strides = [1, 1]} : vector<9x4xf32> to vector<4x4xf32>
    %31 = math.exp %30 : vector<4x4xf32>
    %cst_17 = arith.constant dense<0xFF800000> : vector<4xf32>
    %32 = vector.multi_reduction <maximumf>, %23, %cst_17 [0] : vector<4x4xf32> to vector<4xf32>
    %33 = vector.shape_cast %32 : vector<4xf32> to vector<1x4xf32>
    %34 = tpu.iota {dimensions = array<i32: 0>} : vector<4x4xi32>
    %35 = vector.broadcast %33 : vector<1x4xf32> to vector<4x4xf32>
    %36 = arith.cmpf oeq, %23, %35 : vector<4x4xf32>
    %c4_i32 = arith.constant 4 : i32
    %37 = vector.broadcast %c4_i32 : i32 to vector<4x4xi32>
    %38 = arith.select %36, %34, %37 : vector<4x4xi1>, vector<4x4xi32>
    %cst_18 = arith.constant dense<2147483647> : vector<4xi32>
    %39 = vector.multi_reduction <minsi>, %38, %cst_18 [0] : vector<4x4xi32> to vector<4xi32>
    %40 = vector.shape_cast %39 : vector<4xi32> to vector<1x4xi32>
    %c1_i32 = arith.constant 1 : i32
    %41 = vector.broadcast %c1_i32 : i32 to vector<1x4xi32>
    %42 = arith.addi %40, %41 : vector<1x4xi32>
    %43 = arith.sitofp %42 : vector<1x4xi32> to vector<1x4xf32>
    %44 = arith.mulf %33, %29 : vector<1x4xf32>
    %45 = math.sqrt %44 : vector<1x4xf32>
    %c4_i32_19 = arith.constant 4 : i32
    %46 = arith.muli %arg1, %c4_i32_19 : i32
    %47 = tpu.iota {dimensions = array<i32: 1>} : vector<1x4xi32>
    %48 = vector.broadcast %46 : i32 to vector<1x4xi32>
    %49 = arith.addi %48, %47 : vector<1x4xi32>
    %c4_i32_20 = arith.constant 4 : i32
    %50 = vector.broadcast %c4_i32_20 : i32 to vector<1x4xi32>
    %51 = arith.cmpi slt, %49, %50 : vector<1x4xi32>
    %cst_21 = arith.constant -1.000000e+00 : f32
    %52 = vector.broadcast %cst_21 : f32 to vector<1x4xf32>
    %53 = arith.select %51, %45, %52 : vector<1x4xi1>, vector<1x4xf32>
    %c0_22 = arith.constant 0 : index
    %c0_23 = arith.constant 0 : index
    %54 = vector.load %arg7[%c0_22, %c0_23] : memref<2x4xf32, #tpu.memory_space<vmem>>, vector<1x4xf32>
    %c1 = arith.constant 1 : index
    %c0_24 = arith.constant 0 : index
    %55 = vector.load %arg7[%c1, %c0_24] : memref<2x4xf32, #tpu.memory_space<vmem>>, vector<1x4xf32>
    %56 = vector.extract_strided_slice %31 {offsets = [0, 0], sizes = [1, 4], strides = [1, 1]} : vector<4x4xf32> to vector<1x4xf32>
    %57 = arith.subf %54, %56 : vector<1x4xf32>
    %cst_25 = arith.constant 0.000000e+00 : f32
    %cst_26 = arith.constant 3.100000e+01 : f32
    %58 = vector.broadcast %cst_25 : f32 to vector<1x4xf32>
    %59 = arith.maximumf %58, %57 : vector<1x4xf32>
    %60 = vector.broadcast %cst_26 : f32 to vector<1x4xf32>
    %61 = arith.minimumf %60, %59 : vector<1x4xf32>
    %62 = vector.extract_strided_slice %31 {offsets = [1, 0], sizes = [1, 4], strides = [1, 1]} : vector<4x4xf32> to vector<1x4xf32>
    %63 = arith.subf %55, %62 : vector<1x4xf32>
    %cst_27 = arith.constant 0.000000e+00 : f32
    %cst_28 = arith.constant 3.100000e+01 : f32
    %64 = vector.broadcast %cst_27 : f32 to vector<1x4xf32>
    %65 = arith.maximumf %64, %63 : vector<1x4xf32>
    %66 = vector.broadcast %cst_28 : f32 to vector<1x4xf32>
    %67 = arith.minimumf %66, %65 : vector<1x4xf32>
    %68 = vector.extract_strided_slice %31 {offsets = [2, 0], sizes = [1, 4], strides = [1, 1]} : vector<4x4xf32> to vector<1x4xf32>
    %69 = arith.addf %54, %68 : vector<1x4xf32>
    %cst_29 = arith.constant 0.000000e+00 : f32
    %cst_30 = arith.constant 3.100000e+01 : f32
    %70 = vector.broadcast %cst_29 : f32 to vector<1x4xf32>
    %71 = arith.maximumf %70, %69 : vector<1x4xf32>
    %72 = vector.broadcast %cst_30 : f32 to vector<1x4xf32>
    %73 = arith.minimumf %72, %71 : vector<1x4xf32>
    %74 = vector.extract_strided_slice %31 {offsets = [3, 0], sizes = [1, 4], strides = [1, 1]} : vector<4x4xf32> to vector<1x4xf32>
    %75 = arith.addf %55, %74 : vector<1x4xf32>
    %cst_31 = arith.constant 0.000000e+00 : f32
    %cst_32 = arith.constant 3.100000e+01 : f32
    %76 = vector.broadcast %cst_31 : f32 to vector<1x4xf32>
    %77 = arith.maximumf %76, %75 : vector<1x4xf32>
    %78 = vector.broadcast %cst_32 : f32 to vector<1x4xf32>
    %79 = arith.minimumf %78, %77 : vector<1x4xf32>
    %cst_33 = arith.constant 0.000000e+00 : f32
    %80 = vector.broadcast %cst_33 : f32 to vector<2x4xf32>
    %81 = tpu.concatenate %53, %43, %61, %67, %73, %79, %80 in 0 : vector<1x4xf32>, vector<1x4xf32>, vector<1x4xf32>, vector<1x4xf32>, vector<1x4xf32>, vector<1x4xf32>, vector<2x4xf32> -> vector<8x4xf32>
    %c0_34 = arith.constant 0 : index
    %c0_35 = arith.constant 0 : index
    %c0_36 = arith.constant 0 : index
    %82 = vector.load %arg9[%c0_34, %c0_35, %c0_36] : memref<1x8x4xf32, #tpu.memory_space<vmem>>, vector<1x8x4xf32>
    %83 = vector.shape_cast %82 : vector<1x8x4xf32> to vector<8x4xf32>
    %84 = vector.shape_cast %81 : vector<8x4xf32> to vector<1x8x4xf32>
    tpu.vector_store %arg9[%c0_34, %c0_35, %c0_36], %84 {strides = array<i32>} : memref<1x8x4xf32, #tpu.memory_space<vmem>>, vector<1x8x4xf32>,
    return
  }
  func.func @transform_0(%arg0: i32, %arg1: i32) -> (i32, i32, i32) {
    %c0_i32 = arith.constant 0 : i32
    %c0_i32_0 = arith.constant 0 : i32
    return %arg0, %c0_i32, %arg1 : i32, i32, i32
  }
  func.func @transform_1(%arg0: i32, %arg1: i32) -> (i32, i32) {
    %c0_i32 = arith.constant 0 : i32
    %c0_i32_0 = arith.constant 0 : i32
    %c0_i32_1 = arith.constant 0 : i32
    return %c0_i32, %c0_i32_0 : i32, i32
  }
  func.func @transform_2(%arg0: i32, %arg1: i32) -> (i32, i32) {
    %c0_i32 = arith.constant 0 : i32
    %c0_i32_0 = arith.constant 0 : i32
    %c0_i32_1 = arith.constant 0 : i32
    return %c0_i32, %c0_i32_0 : i32, i32
  }
  func.func @transform_3(%arg0: i32, %arg1: i32) -> (i32, i32) {
    %c0_i32 = arith.constant 0 : i32
    %c0_i32_0 = arith.constant 0 : i32
    %c0_i32_1 = arith.constant 0 : i32
    return %c0_i32, %c0_i32_0 : i32, i32
  }
  func.func @transform_4(%arg0: i32, %arg1: i32) -> (i32, i32) {
    %c0_i32 = arith.constant 0 : i32
    %c0_i32_0 = arith.constant 0 : i32
    %c0_i32_1 = arith.constant 0 : i32
    return %c0_i32, %c0_i32_0 : i32, i32
  }
  func.func @transform_5(%arg0: i32, %arg1: i32) -> (i32, i32) {
    %c0_i32 = arith.constant 0 : i32
    %c0_i32_0 = arith.constant 0 : i32
    return %c0_i32, %arg1 : i32, i32
  }
  func.func @transform_6(%arg0: i32, %arg1: i32) -> (i32, i32, i32) {
    %c0_i32 = arith.constant 0 : i32
    %c0_i32_0 = arith.constant 0 : i32
    return %arg0, %c0_i32, %arg1 : i32, i32, i32
  }
  func.func @transform_7(%arg0: i32, %arg1: i32) -> (i32, i32, i32) {
    %c0_i32 = arith.constant 0 : i32
    %c0_i32_0 = arith.constant 0 : i32
    return %arg0, %c0_i32, %arg1 : i32, i32, i32
  }
}

</mosaic_0001>

<llo_original>
// kernel: fcos_detector_inference.4
$region0: #{fcos_detector_inference.4}
  #allocation0 [shape = 'u32[]', space=smem, size = 0x4, offset = 0x4, fixed_abs, tag = 'smem constant byte address 0x4 - core index']
  #allocation1 [shape = 'u32[72,128]{1,0:T(1,128)}', space=vmem, size = 0x9000, scoped, tag = 'internal scratch']
  %s0 = inlined_call_operand.vmem [shape: f32[2,3,1024], index: 0, kind: input, shape index: {}]
  %s1 = inlined_call_operand.vmem [shape: f32[16,3], index: 1, kind: input, shape index: {}]
  %s2 = inlined_call_operand.vmem [shape: f32[16,1], index: 2, kind: input, shape index: {}]
  %s3 = inlined_call_operand.vmem [shape: bf16[2,16,1024], index: 3, kind: output, shape index: {}]
  %s4 = sld [smem:[#allocation0]]
  $region45: #{fcos_detector_inference.4} parent=0
    _
  %s6 = ssub.s32 1, %s4
  %s7 = scalar_select 0, %s6, %s4
  loop: start=0, step=1, limit=4
  $region2: #{fcos_detector_inference.4} parent=0 // loop_pre_header
    _
  $region3: #{fcos_detector_inference.4} parent=0 // loop_header
    %s9 = sphi 0, %s13
    %p10 = scmp.ge.s32.totalorder %s9, 4
    %s16 = sphi 0, %s28
    %s17 = sphi 0, %s24
    %s18 = sphi 0, %s16
    %s19 = sphi 0, %s17
    %s20 = sphi 0, %s18
    %s21 = sphi 0, %s19
    %s33 = sphi 0, %s35
    %s36 = sphi 0, %s33
    %s37 = sphi 0, %s36
    %s53 = sphi 0, %s37
    %s57 = sphi 0, %s57
    %s59 = sphi 0, %s57
    %s60 = sphi 0, %s59
    %s74 = sphi 0, %s60
    %s78 = sphi 0, %s78
    %s80 = sphi 0, %s78
    %s81 = sphi 0, %s80
    %s95 = sphi 0, %s81
    %s103 = sphi 0, %s105
    %s106 = sphi 0, %s103
    %s107 = sphi 0, %s106
    %s123 = sphi 0, %s107
  $region4: #{fcos_detector_inference.4} parent=0 // loop_header_branch
    %12 = sbr.rel (%p10) target = $region8
  $region5: #{fcos_detector_inference.4} parent=0 // loop_body
    %s14 = ssub.s32 %s9, 1
    %s15 = ssub.s32 %s9, 2
    %s22 = sadd.s32 1, %s17
    %p23 = scmp.ge.s32.totalorder %s22, 1
    %s24 = scalar_select %p23, 0, %s22
    %s25 = sadd.s32 1, %s16
    %s26 = scalar_select %p23, %s25, %s16
    %p27 = scmp.ge.s32.totalorder %s26, 2
    %s28 = scalar_select %p27, 0, %s26
    %s29 = ssub.s32 %s16, %s28
    %s30 = ssub.s32 %s17, %s24
    %s31 = sor.u32 %s29, %s30
    %p32 = scmp.eq.s32.totalorder %s31, 0
    %s34 = sadd.s32 %s33, 1
    %s35 = scalar_select %p32, %s33, %s34
    %p38 = pneg %p32
    %p39 = scmp.eq.s32.totalorder %s9, 1
    %p40 = por %p38, %p39
    %p41 = scmp.ne.s32.totalorder %s33, %s36
    %p42 = scmp.eq.s32.totalorder %s9, 0
    %p43 = por %p41, %p42
    %p44 = scmp.ne.s32.totalorder %s33, %s36
    %p45 = scmp.eq.s32.totalorder %s14, 1
    %p46 = por %p44, %p45
    %p47 = scmp.ne.s32.totalorder %s36, %s37
    %p48 = scmp.eq.s32.totalorder %s14, 0
    %p49 = por %p47, %p48
    %p50 = scmp.ne.s32.totalorder %s36, %s37
    %p51 = scmp.eq.s32.totalorder %s15, 1
    %p52 = por %p50, %p51
    %p54 = scmp.ne.s32.totalorder %s37, %s53
    %p55 = scmp.eq.s32.totalorder %s15, 0
    %p56 = por %p54, %p55
    %s58 = sadd.s32 %s57, 1
    %p61 = scmp.eq.s32.totalorder %s9, 1
    %p62 = scmp.ne.s32.totalorder %s57, %s59
    %p63 = scmp.eq.s32.totalorder %s9, 0
    %p64 = por %p62, %p63
    %p65 = scmp.ne.s32.totalorder %s57, %s59
    %p66 = scmp.eq.s32.totalorder %s14, 1
    %p67 = por %p65, %p66
    %p68 = scmp.ne.s32.totalorder %s59, %s60
    %p69 = scmp.eq.s32.totalorder %s14, 0
    %p70 = por %p68, %p69
    %p71 = scmp.ne.s32.totalorder %s59, %s60
    %p72 = scmp.eq.s32.totalorder %s15, 1
    %p73 = por %p71, %p72
    %p75 = scmp.ne.s32.totalorder %s60, %s74
    %p76 = scmp.eq.s32.totalorder %s15, 0
    %p77 = por %p75, %p76
    %s79 = sadd.s32 %s78, 1
    %p82 = scmp.eq.s32.totalorder %s9, 1
    %p83 = scmp.ne.s32.totalorder %s78, %s80
    %p84 = scmp.eq.s32.totalorder %s9, 0
    %p85 = por %p83, %p84
    %p86 = scmp.ne.s32.totalorder %s78, %s80
    %p87 = scmp.eq.s32.totalorder %s14, 1
    %p88 = por %p86, %p87
    %p89 = scmp.ne.s32.totalorder %s80, %s81
    %p90 = scmp.eq.s32.totalorder %s14, 0
    %p91 = por %p89, %p90
    %p92 = scmp.ne.s32.totalorder %s80, %s81
    %p93 = scmp.eq.s32.totalorder %s15, 1
    %p94 = por %p92, %p93
    %p96 = scmp.ne.s32.totalorder %s81, %s95
    %p97 = scmp.eq.s32.totalorder %s15, 0
    %p98 = por %p96, %p97
    %s99 = ssub.s32 %s16, %s28
    %s100 = ssub.s32 %s17, %s24
    %s101 = sor.u32 %s99, %s100
    %p102 = scmp.eq.s32.totalorder %s101, 0
    %s104 = sadd.s32 %s103, 1
    %s105 = scalar_select %p102, %s103, %s104
    %p108 = pneg %p102
    %p109 = scmp.eq.s32.totalorder %s9, 1
    %p110 = por %p108, %p109
    %p111 = scmp.ne.s32.totalorder %s103, %s106
    %p112 = scmp.eq.s32.totalorder %s9, 0
    %p113 = por %p111, %p112
    %p114 = scmp.ne.s32.totalorder %s103, %s106
    %p115 = scmp.eq.s32.totalorder %s14, 1
    %p116 = por %p114, %p115
    %p117 = scmp.ne.s32.totalorder %s106, %s107
    %p118 = scmp.eq.s32.totalorder %s14, 0
    %p119 = por %p117, %p118
    %p120 = scmp.ne.s32.totalorder %s106, %s107
    %p121 = scmp.eq.s32.totalorder %s15, 1
    %p122 = por %p120, %p121
    %p124 = scmp.ne.s32.totalorder %s107, %s123
    %p125 = scmp.eq.s32.totalorder %s15, 0
    %p126 = por %p124, %p125
    %p127 = scmp.le.s32.totalorder 1, %s9
    %p128 = scmp.lt.s32.totalorder %s9, 3
    %p129 = pnand %p127, %p128
    %p130 = pneg %p129
    // Predicated region
    $region9: #{fcos_detector_inference.4} parent=5 // pred_check
      _
    $region10: #{fcos_detector_inference.4} parent=5 // pred_check_branch
      %132 = sbr.rel (%p129) target = $region12
    $region11: #{fcos_detector_inference.4} parent=5 // pred_region
      %s133 = ssub.s32 %s9, 1
      // Predicated region
      $region13: #{fcos_detector_inference.4} parent=11 // pred_check
        %p134 = pneg %p70
      $region14: #{fcos_detector_inference.4} parent=11 // pred_check_branch
        %136 = sbr.rel (%p134) target = $region16
      $region15: #{fcos_detector_inference.4} parent=11 // pred_region
        _
      $region16: #{fcos_detector_inference.4} parent=11 // pred_fallthru
        _
      // Predicated region
      $region17: #{fcos_detector_inference.4} parent=11 // pred_check
        %p137 = pneg %p91
      $region18: #{fcos_detector_inference.4} parent=11 // pred_check_branch
        %139 = sbr.rel (%p137) target = $region20
      $region19: #{fcos_detector_inference.4} parent=11 // pred_region
        _
      $region20: #{fcos_detector_inference.4} parent=11 // pred_fallthru
        _
    $region12: #{fcos_detector_inference.4} parent=5 // pred_fallthru
      _
    %p140 = scmp.lt.s32.totalorder %s9, 2
    // Predicated region
    $region21: #{fcos_detector_inference.4} parent=5 // pred_check
      %p141 = pneg %p140
    $region22: #{fcos_detector_inference.4} parent=5 // pred_check_branch
      %143 = sbr.rel (%p141) target = $region24
    $region23: #{fcos_detector_inference.4} parent=5 // pred_region
      // Predicated region
      $region25: #{fcos_detector_inference.4} parent=23 // pred_check
        %p144 = pneg %p43
      $region26: #{fcos_detector_inference.4} parent=23 // pred_check_branch
        %146 = sbr.rel (%p144) target = $region28
      $region27: #{fcos_detector_inference.4} parent=23 // pred_region
        %s147 = smul.u32 8, %s17
        %p148 = scmp.lt.s32.totalorder %s16, 1
        %s149 = scalar_select %p148, %s16, 1
        %p150 = scmp.lt.s32.totalorder %s147, 7
        %s151 = scalar_select %p150, %s147, 7
        %s152 = smul.addr %s149, 8
        %s153 = sadd.s32 %s151, %s152
        %s154 = smul.addr %s153, 4
        %s155 = scalar_lea.vmem %s0, %s154
        %s156 = smul.u32 8, %s17
      $region28: #{fcos_detector_inference.4} parent=23 // pred_fallthru
        _
    $region24: #{fcos_detector_inference.4} parent=5 // pred_fallthru
      _
    %p157 = scmp.le.s32.totalorder 1, %s9
    %p158 = scmp.lt.s32.totalorder %s9, 3
    %p159 = pnand %p157, %p158
    %p160 = pneg %p159
    // Predicated region
    $region29: #{fcos_detector_inference.4} parent=5 // pred_check
      _
    $region30: #{fcos_detector_inference.4} parent=5 // pred_check_branch
      %162 = sbr.rel (%p159) target = $region32
    $region31: #{fcos_detector_inference.4} parent=5 // pred_region
      %s163 = ssub.s32 %s9, 1
      %s164 = smul.u32 8, %s19
      %p165 = scmp.lt.s32.totalorder %s18, 1
      %s166 = scalar_select %p165, %s18, 1
      %p167 = scmp.lt.s32.totalorder %s164, 7
      %s168 = scalar_select %p167, %s164, 7
      %s169 = smul.addr %s166, 8
      %s170 = sadd.s32 %s168, %s169
      %s171 = smul.addr %s170, 4
      %s172 = scalar_lea.vmem %s0, %s171
      %p173 = pneg %p49
      %p174 = pneg %p46
      %p175 = pneg %p70
      %p176 = pneg %p67
      %p177 = pneg %p91
      %p178 = pneg %p88
      %p179 = pneg %p119
      %p180 = pneg %p116
      %s181 = smul.u32 8, %s19
      %p182 = scmp.lt.s32.totalorder %s18, 1
      %s183 = scalar_select %p182, %s18, 1
      %p184 = scmp.lt.s32.totalorder %s181, 7
      %s185 = scalar_select %p184, %s181, 7
      %s186 = smul.addr %s183, 16
      %s187 = sadd.s32 %s185, %s186
      %s188 = smul.addr %s187, 4
      %s189 = scalar_lea.vmem %s3, %s188
      %s190 = smul.u32 8, %s19
      %p191 = scmp.lt.s32.totalorder %s18, 1
      %s192 = scalar_select %p191, %s18, 1
      %p193 = scmp.lt.s32.totalorder %s190, 7
      %s194 = scalar_select %p193, %s190, 7
      %s195 = smul.addr %s192, 8
      %s196 = sadd.s32 %s194, %s195
      %s197 = smul.addr %s196, 4
      %s198 = scalar_lea.vmem %s0, %s197
      %s199 = smul.u32 8, %s19
      %s200 = smul.u32 8, %s19
      %p201 = scmp.lt.s32.totalorder %s18, 1
      %s202 = scalar_select %p201, %s18, 1
      %p203 = scmp.lt.s32.totalorder %s200, 7
      %s204 = scalar_select %p203, %s200, 7
      %s205 = smul.addr %s202, 16
      %s206 = sadd.s32 %s204, %s205
      %s207 = smul.addr %s206, 4
      %s208 = scalar_lea.vmem %s3, %s207
      %s209 = smul.u32 8, %s19
      %v210 = vld [vmem:[%s1] sm:$0xff]
      %v211 = vld [vmem:[%s1 + $0x8] sm:$0xff]
      %v212 = vld [vmem:[%s198] sm:$0x77]
      %v213 = vld [vmem:[%s198 + $0x8] sm:$0x77]
      %v214 = vld [vmem:[%s198 + $0x10] sm:$0x77]
      %v215 = vld [vmem:[%s198 + $0x18] sm:$0x77]
      %v216 = vld [vmem:[%s2] sm:$0xff]
      %v217 = vld [vmem:[%s2 + $0x8] sm:$0xff]
      %219 = vset.pattern.permute.xlu0 0
      %220 = vperm.xlu0 %219, %v216
      %v221 = vpop.permute.xlu0 %220
      %224 = vset.pattern.permute.xlu0 0
      %225 = vperm.xlu0 %224, %v217
      %v226 = vpop.permute.xlu0 %225
      %232 = vst [vmem:[#allocation1] ss:$2 sm:$0xff] %v212
      %s233 = scalar_lea.vmem [#allocation1], 16
      %234 = vst [vmem:[%s233] ss:$2 sm:$0xff] %v213
      %s235 = scalar_lea.vmem [#allocation1], 32
      %236 = vst [vmem:[%s235] ss:$2 sm:$0xff] %v214
      %s237 = scalar_lea.vmem [#allocation1], 48
      %238 = vst [vmem:[%s237] ss:$2 sm:$0xff] %v215
      %v239 = vld.sshfl [vmem:[#allocation1] sm:$0xff pattern:$0x75316420]
      %v240 = vld.sshfl [vmem:[#allocation1 + $0x8] sm:$0xff pattern:$0x75316420]
      %v241 = vld.sshfl [vmem:[#allocation1 + $0x10] sm:$0xff pattern:$0x75316420]
      %v242 = vld.sshfl [vmem:[#allocation1 + $0x18] sm:$0xff pattern:$0x75316420]
      %v243 = vld.sshfl [vmem:[#allocation1 + $0x20] sm:$0xff pattern:$0x75316420]
      %v244 = vld.sshfl [vmem:[#allocation1 + $0x28] sm:$0xff pattern:$0x75316420]
      %v245 = vld.sshfl [vmem:[#allocation1 + $0x30] sm:$0xff pattern:$0x75316420]
      %v246 = vld.sshfl [vmem:[#allocation1 + $0x38] sm:$0xff pattern:$0x75316420]
      %vm247 = vcmask 23552
      %v249 = vsel %vm247, %v210, 0
      %v252 = vsel %vm247, %v211, 0
      %vm254 = vcmask 1042432
      %v255 = vsel %vm254, %v239, 0
      %v257 = vsel %vm254, %v240, 0
      %v259 = vsel %vm254, %v241, 0
      %v261 = vsel %vm254, %v242, 0
      %v263 = vsel %vm254, %v243, 0
      %v265 = vsel %vm254, %v244, 0
      %v267 = vsel %vm254, %v245, 0
      %v269 = vsel %vm254, %v246, 0
      %271 = vmatpush.msra.mxu0 0.0
      %272 = vmatpush.msra.mxu0 0.0
      %273 = vmatpush.msra.mxu0 0.0
      %274 = vmatpush.msra.mxu0 0.0
      %275 = vmatpush.msra.mxu0 0.0
      %276 = vmatpush.msra.mxu0 0.0
      %277 = vmatpush.msra.mxu0 0.0
      %278 = vmatpush.msra.mxu0 0.0
      %279 = vmatpush.msra.mxu0 0.0
      %280 = vmatpush.msra.mxu0 0.0
      %281 = vmatpush.msra.mxu0 0.0
      %282 = vmatpush.msra.mxu0 0.0
      %283 = vmatpush.msra.mxu0 0.0
      %284 = vmatpush.msra.mxu0 0.0
      %285 = vmatpush.msra.mxu0 0.0
      %286 = vmatpush.msra.mxu0 %v255
      %287 = vmatmul.f32.gmra.mxu0 %v249
      %v288 = vpop.f32.mrf.mxu0
      %v289 = vadd.f32 %v221, %v288
      %290 = vmatmul.f32.gmra.mxu0 %v252
      %v291 = vpop.f32.mrf.mxu0
      %v292 = vadd.f32 %v226, %v291
      %293 = vdwg.mxu0
      %294 = vmatpush.msra.mxu0 0.0
      %295 = vmatpush.msra.mxu0 0.0
      %296 = vmatpush.msra.mxu0 0.0
      %297 = vmatpush.msra.mxu0 0.0
      %298 = vmatpush.msra.mxu0 0.0
      %299 = vmatpush.msra.mxu0 0.0
      %300 = vmatpush.msra.mxu0 0.0
      %301 = vmatpush.msra.mxu0 0.0
      %302 = vmatpush.msra.mxu0 0.0
      %303 = vmatpush.msra.mxu0 0.0
      %304 = vmatpush.msra.mxu0 0.0
      %305 = vmatpush.msra.mxu0 0.0
      %306 = vmatpush.msra.mxu0 0.0
      %307 = vmatpush.msra.mxu0 0.0
      %308 = vmatpush.msra.mxu0 0.0
      %309 = vmatpush.msra.mxu0 %v257
      %310 = vmatmul.f32.gmra.mxu0 %v249
      %v311 = vpop.f32.mrf.mxu0
      %v312 = vadd.f32 %v221, %v311
      %313 = vmatmul.f32.gmra.mxu0 %v252
      %v314 = vpop.f32.mrf.mxu0
      %v315 = vadd.f32 %v226, %v314
      %316 = vdwg.mxu0
      %317 = vmatpush.msra.mxu0 0.0
      %318 = vmatpush.msra.mxu0 0.0
      %319 = vmatpush.msra.mxu0 0.0
      %320 = vmatpush.msra.mxu0 0.0
      %321 = vmatpush.msra.mxu0 0.0
      %322 = vmatpush.msra.mxu0 0.0
      %323 = vmatpush.msra.mxu0 0.0
      %324 = vmatpush.msra.mxu0 0.0
      %325 = vmatpush.msra.mxu0 0.0
      %326 = vmatpush.msra.mxu0 0.0
      %327 = vmatpush.msra.mxu0 0.0
      %328 = vmatpush.msra.mxu0 0.0
      %329 = vmatpush.msra.mxu0 0.0
      %330 = vmatpush.msra.mxu0 0.0
      %331 = vmatpush.msra.mxu0 0.0
      %332 = vmatpush.msra.mxu0 %v259
      %333 = vmatmul.f32.gmra.mxu0 %v249
      %v334 = vpop.f32.mrf.mxu0
      %v335 = vadd.f32 %v221, %v334
      %336 = vmatmul.f32.gmra.mxu0 %v252
      %v337 = vpop.f32.mrf.mxu0
      %v338 = vadd.f32 %v226, %v337
      %339 = vdwg.mxu0
      %340 = vmatpush.msra.mxu0 0.0
      %341 = vmatpush.msra.mxu0 0.0
      %342 = vmatpush.msra.mxu0 0.0
      %343 = vmatpush.msra.mxu0 0.0
      %344 = vmatpush.msra.mxu0 0.0
      %345 = vmatpush.msra.mxu0 0.0
      %346 = vmatpush.msra.mxu0 0.0
      %347 = vmatpush.msra.mxu0 0.0
      %348 = vmatpush.msra.mxu0 0.0
      %349 = vmatpush.msra.mxu0 0.0
      %350 = vmatpush.msra.mxu0 0.0
      %351 = vmatpush.msra.mxu0 0.0
      %352 = vmatpush.msra.mxu0 0.0
      %353 = vmatpush.msra.mxu0 0.0
      %354 = vmatpush.msra.mxu0 0.0
      %355 = vmatpush.msra.mxu0 %v261
      %356 = vmatmul.f32.gmra.mxu0 %v249
      %v357 = vpop.f32.mrf.mxu0
      %v358 = vadd.f32 %v221, %v357
      %359 = vmatmul.f32.gmra.mxu0 %v252
      %v360 = vpop.f32.mrf.mxu0
      %v361 = vadd.f32 %v226, %v360
      %362 = vdwg.mxu0
      %363 = vmatpush.msra.mxu0 0.0
      %364 = vmatpush.msra.mxu0 0.0
      %365 = vmatpush.msra.mxu0 0.0
      %366 = vmatpush.msra.mxu0 0.0
      %367 = vmatpush.msra.mxu0 0.0
      %368 = vmatpush.msra.mxu0 0.0
      %369 = vmatpush.msra.mxu0 0.0
      %370 = vmatpush.msra.mxu0 0.0
      %371 = vmatpush.msra.mxu0 0.0
      %372 = vmatpush.msra.mxu0 0.0
      %373 = vmatpush.msra.mxu0 0.0
      %374 = vmatpush.msra.mxu0 0.0
      %375 = vmatpush.msra.mxu0 0.0
      %376 = vmatpush.msra.mxu0 0.0
      %377 = vmatpush.msra.mxu0 0.0
      %378 = vmatpush.msra.mxu0 %v263
      %379 = vmatmul.f32.gmra.mxu0 %v249
      %v380 = vpop.f32.mrf.mxu0
      %v381 = vadd.f32 %v221, %v380
      %382 = vmatmul.f32.gmra.mxu0 %v252
      %v383 = vpop.f32.mrf.mxu0
      %v384 = vadd.f32 %v226, %v383
      %385 = vdwg.mxu0
      %386 = vmatpush.msra.mxu0 0.0
      %387 = vmatpush.msra.mxu0 0.0
      %388 = vmatpush.msra.mxu0 0.0
      %389 = vmatpush.msra.mxu0 0.0
      %390 = vmatpush.msra.mxu0 0.0
      %391 = vmatpush.msra.mxu0 0.0
      %392 = vmatpush.msra.mxu0 0.0
      %393 = vmatpush.msra.mxu0 0.0
      %394 = vmatpush.msra.mxu0 0.0
      %395 = vmatpush.msra.mxu0 0.0
      %396 = vmatpush.msra.mxu0 0.0
      %397 = vmatpush.msra.mxu0 0.0
      %398 = vmatpush.msra.mxu0 0.0
      %399 = vmatpush.msra.mxu0 0.0
      %400 = vmatpush.msra.mxu0 0.0
      %401 = vmatpush.msra.mxu0 %v265
      %402 = vmatmul.f32.gmra.mxu0 %v249
      %v403 = vpop.f32.mrf.mxu0
      %v404 = vadd.f32 %v221, %v403
      %405 = vmatmul.f32.gmra.mxu0 %v252
      %v406 = vpop.f32.mrf.mxu0
      %v407 = vadd.f32 %v226, %v406
      %408 = vdwg.mxu0
      %409 = vmatpush.msra.mxu0 0.0
      %410 = vmatpush.msra.mxu0 0.0
      %411 = vmatpush.msra.mxu0 0.0
      %412 = vmatpush.msra.mxu0 0.0
      %413 = vmatpush.msra.mxu0 0.0
      %414 = vmatpush.msra.mxu0 0.0
      %415 = vmatpush.msra.mxu0 0.0
      %416 = vmatpush.msra.mxu0 0.0
      %417 = vmatpush.msra.mxu0 0.0
      %418 = vmatpush.msra.mxu0 0.0
      %419 = vmatpush.msra.mxu0 0.0
      %420 = vmatpush.msra.mxu0 0.0
      %421 = vmatpush.msra.mxu0 0.0
      %422 = vmatpush.msra.mxu0 0.0
      %423 = vmatpush.msra.mxu0 0.0
      %424 = vmatpush.msra.mxu0 %v267
      %425 = vmatmul.f32.gmra.mxu0 %v249
      %v426 = vpop.f32.mrf.mxu0
      %v427 = vadd.f32 %v221, %v426
      %428 = vmatmul.f32.gmra.mxu0 %v252
      %v429 = vpop.f32.mrf.mxu0
      %v430 = vadd.f32 %v226, %v429
      %431 = vdwg.mxu0
      %432 = vmatpush.msra.mxu0 0.0
      %433 = vmatpush.msra.mxu0 0.0
      %434 = vmatpush.msra.mxu0 0.0
      %435 = vmatpush.msra.mxu0 0.0
      %436 = vmatpush.msra.mxu0 0.0
      %437 = vmatpush.msra.mxu0 0.0
      %438 = vmatpush.msra.mxu0 0.0
      %439 = vmatpush.msra.mxu0 0.0
      %440 = vmatpush.msra.mxu0 0.0
      %441 = vmatpush.msra.mxu0 0.0
      %442 = vmatpush.msra.mxu0 0.0
      %443 = vmatpush.msra.mxu0 0.0
      %444 = vmatpush.msra.mxu0 0.0
      %445 = vmatpush.msra.mxu0 0.0
      %446 = vmatpush.msra.mxu0 0.0
      %447 = vmatpush.msra.mxu0 %v269
      %448 = vmatmul.f32.gmra.mxu0 %v249
      %v449 = vpop.f32.mrf.mxu0
      %v450 = vadd.f32 %v221, %v449
      %451 = vmatmul.f32.gmra.mxu0 %v252
      %v452 = vpop.f32.mrf.mxu0
      %v453 = vadd.f32 %v226, %v452
      %454 = vdwg.mxu0
      %v455 = vmax.f32 %v289, 0.0
      %v456 = vmax.f32 %v312, 0.0
      %v457 = vmax.f32 %v335, 0.0
      %v458 = vmax.f32 %v358, 0.0
      %v459 = vmax.f32 %v381, 0.0
      %v460 = vmax.f32 %v404, 0.0
      %v461 = vmax.f32 %v427, 0.0
      %v462 = vmax.f32 %v450, 0.0
      %v463 = vmax.f32 %v292, 0.0
      %v464 = vmax.f32 %v315, 0.0
      %v465 = vmax.f32 %v338, 0.0
      %v466 = vmax.f32 %v361, 0.0
      %v467 = vmax.f32 %v384, 0.0
      %v468 = vmax.f32 %v407, 0.0
      %v469 = vmax.f32 %v430, 0.0
      %v470 = vmax.f32 %v453, 0.0
      %v471 = vpack.c.bf16 %v456, %v455
      %v472 = vpack.c.bf16 %v458, %v457
      %v473 = vpack.c.bf16 %v460, %v459
      %v474 = vpack.c.bf16 %v462, %v461
      %v475 = vpack.c.bf16 %v464, %v463
      %v476 = vpack.c.bf16 %v466, %v465
      %v477 = vpack.c.bf16 %v468, %v467
      %v478 = vpack.c.bf16 %v470, %v469
      %479 = vst [vmem:[%s208] sm:$0xff] %v471
      %480 = vst [vmem:[%s208 + $0x8] sm:$0xff] %v472
      %481 = vst [vmem:[%s208 + $0x10] sm:$0xff] %v473
      %482 = vst [vmem:[%s208 + $0x18] sm:$0xff] %v474
      %483 = vst [vmem:[%s208 + $0x20] sm:$0xff] %v475
      %484 = vst [vmem:[%s208 + $0x28] sm:$0xff] %v476
      %485 = vst [vmem:[%s208 + $0x30] sm:$0xff] %v477
      %486 = vst [vmem:[%s208 + $0x38] sm:$0xff] %v478
      %s487 = smul.u32 8, %s19
      %p488 = scmp.lt.s32.totalorder %s18, 1
      %s489 = scalar_select %p488, %s18, 1
      %p490 = scmp.lt.s32.totalorder %s487, 7
      %s491 = scalar_select %p490, %s487, 7
      %s492 = smul.addr %s489, 16
      %s493 = sadd.s32 %s491, %s492
      %s494 = smul.addr %s493, 4
      %s495 = scalar_lea.vmem %s3, %s494
      // Predicated region
      $region33: #{fcos_detector_inference.4} parent=31 // pred_check
        %p496 = pneg %p116
      $region34: #{fcos_detector_inference.4} parent=31 // pred_check_branch
        %498 = sbr.rel (%p496) target = $region36
      $region35: #{fcos_detector_inference.4} parent=31 // pred_region
        %s499 = smul.u32 8, %s19
      $region36: #{fcos_detector_inference.4} parent=31 // pred_fallthru
        _
    $region32: #{fcos_detector_inference.4} parent=5 // pred_fallthru
      _
    %p500 = scmp.le.s32.totalorder 2, %s9
    // Predicated region
    $region37: #{fcos_detector_inference.4} parent=5 // pred_check
      %p501 = pneg %p500
    $region38: #{fcos_detector_inference.4} parent=5 // pred_check_branch
      %503 = sbr.rel (%p501) target = $region40
    $region39: #{fcos_detector_inference.4} parent=5 // pred_region
      %s504 = ssub.s32 %s9, 2
      // Predicated region
      $region41: #{fcos_detector_inference.4} parent=39 // pred_check
        %p505 = pneg %p122
      $region42: #{fcos_detector_inference.4} parent=39 // pred_check_branch
        %507 = sbr.rel (%p505) target = $region44
      $region43: #{fcos_detector_inference.4} parent=39 // pred_region
        %s508 = smul.u32 8, %s21
        %p509 = scmp.lt.s32.totalorder %s20, 1
        %s510 = scalar_select %p509, %s20, 1
        %p511 = scmp.lt.s32.totalorder %s508, 7
        %s512 = scalar_select %p511, %s508, 7
        %s513 = smul.addr %s510, 16
        %s514 = sadd.s32 %s512, %s513
        %s515 = smul.addr %s514, 4
        %s516 = scalar_lea.vmem %s3, %s515
      $region44: #{fcos_detector_inference.4} parent=39 // pred_fallthru
        _
    $region40: #{fcos_detector_inference.4} parent=5 // pred_fallthru
      _
  $region6: #{fcos_detector_inference.4} parent=0 // loop_footer
    %s13 = sadd.s32 1, %s9
  $region7: #{fcos_detector_inference.4} parent=0 // loop_footer_branch
    %8 = sbr.rel target = $region3
  $region8: #{fcos_detector_inference.4} parent=0 // loop_exit
    _

// kernel: fcos_detector_inference.5
$region0: #{fcos_detector_inference.5}
  #allocation0 [shape = 'u32[]', space=smem, size = 0x4, offset = 0x4, fixed_abs, tag = 'smem constant byte address 0x4 - core index']
  #allocation1 [shape = 'u32[72,128]{1,0:T(1,128)}', space=vmem, size = 0x9000, scoped, tag = 'internal scratch']
  %s0 = inlined_call_operand.vmem [shape: bf16[2,16,64], index: 0, kind: input, shape index: {}]
  %s1 = inlined_call_operand.vmem [shape: bf16[16,16], index: 1, kind: input, shape index: {}]
  %s2 = inlined_call_operand.vmem [shape: f32[16,1], index: 2, kind: input, shape index: {}]
  %s3 = inlined_call_operand.vmem [shape: bf16[9,16], index: 3, kind: input, shape index: {}]
  %s4 = inlined_call_operand.vmem [shape: f32[9,1], index: 4, kind: input, shape index: {}]
  %s5 = inlined_call_operand.vmem [shape: f32[2,64], index: 5, kind: input, shape index: {}]
  %s6 = inlined_call_operand.vmem [shape: bf16[2,16,64], index: 6, kind: output, shape index: {0}]
  %s7 = inlined_call_operand.vmem [shape: f32[2,8,64], index: 7, kind: output, shape index: {1}]
  %8 = xla_tuple %s6, %s7
  %s9 = sld [smem:[#allocation0]]
  $region65: #{fcos_detector_inference.5} parent=0
    _
  %s11 = ssub.s32 1, %s9
  %s12 = scalar_select 0, %s11, %s9
  loop: start=0, step=1, limit=4
  $region2: #{fcos_detector_inference.5} parent=0 // loop_pre_header
    _
  $region3: #{fcos_detector_inference.5} parent=0 // loop_header
    %s14 = sphi 0, %s18
    %p15 = scmp.ge.s32.totalorder %s14, 4
    %s21 = sphi 0, %s33
    %s22 = sphi 0, %s29
    %s23 = sphi 0, %s21
    %s24 = sphi 0, %s22
    %s25 = sphi 0, %s23
    %s26 = sphi 0, %s24
    %s38 = sphi 0, %s40
    %s41 = sphi 0, %s38
    %s42 = sphi 0, %s41
    %s58 = sphi 0, %s42
    %s62 = sphi 0, %s62
    %s64 = sphi 0, %s62
    %s65 = sphi 0, %s64
    %s79 = sphi 0, %s65
    %s83 = sphi 0, %s83
    %s85 = sphi 0, %s83
    %s86 = sphi 0, %s85
    %s100 = sphi 0, %s86
    %s104 = sphi 0, %s104
    %s106 = sphi 0, %s104
    %s107 = sphi 0, %s106
    %s121 = sphi 0, %s107
    %s125 = sphi 0, %s125
    %s127 = sphi 0, %s125
    %s128 = sphi 0, %s127
    %s142 = sphi 0, %s128
    %s148 = sphi 0, %s150
    %s151 = sphi 0, %s148
    %s152 = sphi 0, %s151
    %s168 = sphi 0, %s152
    %s176 = sphi 0, %s178
    %s179 = sphi 0, %s176
    %s180 = sphi 0, %s179
    %s196 = sphi 0, %s180
    %s204 = sphi 0, %s206
    %s207 = sphi 0, %s204
    %s208 = sphi 0, %s207
    %s224 = sphi 0, %s208
  $region4: #{fcos_detector_inference.5} parent=0 // loop_header_branch
    %17 = sbr.rel (%p15) target = $region8
  $region5: #{fcos_detector_inference.5} parent=0 // loop_body
    %s19 = ssub.s32 %s14, 1
    %s20 = ssub.s32 %s14, 2
    %s27 = sadd.s32 1, %s22
    %p28 = scmp.ge.s32.totalorder %s27, 1
    %s29 = scalar_select %p28, 0, %s27
    %s30 = sadd.s32 1, %s21
    %s31 = scalar_select %p28, %s30, %s21
    %p32 = scmp.ge.s32.totalorder %s31, 2
    %s33 = scalar_select %p32, 0, %s31
    %s34 = ssub.s32 %s21, %s33
    %s35 = ssub.s32 %s22, %s29
    %s36 = sor.u32 %s34, %s35
    %p37 = scmp.eq.s32.totalorder %s36, 0
    %s39 = sadd.s32 %s38, 1
    %s40 = scalar_select %p37, %s38, %s39
    %p43 = pneg %p37
    %p44 = scmp.eq.s32.totalorder %s14, 1
    %p45 = por %p43, %p44
    %p46 = scmp.ne.s32.totalorder %s38, %s41
    %p47 = scmp.eq.s32.totalorder %s14, 0
    %p48 = por %p46, %p47
    %p49 = scmp.ne.s32.totalorder %s38, %s41
    %p50 = scmp.eq.s32.totalorder %s19, 1
    %p51 = por %p49, %p50
    %p52 = scmp.ne.s32.totalorder %s41, %s42
    %p53 = scmp.eq.s32.totalorder %s19, 0
    %p54 = por %p52, %p53
    %p55 = scmp.ne.s32.totalorder %s41, %s42
    %p56 = scmp.eq.s32.totalorder %s20, 1
    %p57 = por %p55, %p56
    %p59 = scmp.ne.s32.totalorder %s42, %s58
    %p60 = scmp.eq.s32.totalorder %s20, 0
    %p61 = por %p59, %p60
    %s63 = sadd.s32 %s62, 1
    %p66 = scmp.eq.s32.totalorder %s14, 1
    %p67 = scmp.ne.s32.totalorder %s62, %s64
    %p68 = scmp.eq.s32.totalorder %s14, 0
    %p69 = por %p67, %p68
    %p70 = scmp.ne.s32.totalorder %s62, %s64
    %p71 = scmp.eq.s32.totalorder %s19, 1
    %p72 = por %p70, %p71
    %p73 = scmp.ne.s32.totalorder %s64, %s65
    %p74 = scmp.eq.s32.totalorder %s19, 0
    %p75 = por %p73, %p74
    %p76 = scmp.ne.s32.totalorder %s64, %s65
    %p77 = scmp.eq.s32.totalorder %s20, 1
    %p78 = por %p76, %p77
    %p80 = scmp.ne.s32.totalorder %s65, %s79
    %p81 = scmp.eq.s32.totalorder %s20, 0
    %p82 = por %p80, %p81
    %s84 = sadd.s32 %s83, 1
    %p87 = scmp.eq.s32.totalorder %s14, 1
    %p88 = scmp.ne.s32.totalorder %s83, %s85
    %p89 = scmp.eq.s32.totalorder %s14, 0
    %p90 = por %p88, %p89
    %p91 = scmp.ne.s32.totalorder %s83, %s85
    %p92 = scmp.eq.s32.totalorder %s19, 1
    %p93 = por %p91, %p92
    %p94 = scmp.ne.s32.totalorder %s85, %s86
    %p95 = scmp.eq.s32.totalorder %s19, 0
    %p96 = por %p94, %p95
    %p97 = scmp.ne.s32.totalorder %s85, %s86
    %p98 = scmp.eq.s32.totalorder %s20, 1
    %p99 = por %p97, %p98
    %p101 = scmp.ne.s32.totalorder %s86, %s100
    %p102 = scmp.eq.s32.totalorder %s20, 0
    %p103 = por %p101, %p102
    %s105 = sadd.s32 %s104, 1
    %p108 = scmp.eq.s32.totalorder %s14, 1
    %p109 = scmp.ne.s32.totalorder %s104, %s106
    %p110 = scmp.eq.s32.totalorder %s14, 0
    %p111 = por %p109, %p110
    %p112 = scmp.ne.s32.totalorder %s104, %s106
    %p113 = scmp.eq.s32.totalorder %s19, 1
    %p114 = por %p112, %p113
    %p115 = scmp.ne.s32.totalorder %s106, %s107
    %p116 = scmp.eq.s32.totalorder %s19, 0
    %p117 = por %p115, %p116
    %p118 = scmp.ne.s32.totalorder %s106, %s107
    %p119 = scmp.eq.s32.totalorder %s20, 1
    %p120 = por %p118, %p119
    %p122 = scmp.ne.s32.totalorder %s107, %s121
    %p123 = scmp.eq.s32.totalorder %s20, 0
    %p124 = por %p122, %p123
    %s126 = sadd.s32 %s125, 1
    %p129 = scmp.eq.s32.totalorder %s14, 1
    %p130 = scmp.ne.s32.totalorder %s125, %s127
    %p131 = scmp.eq.s32.totalorder %s14, 0
    %p132 = por %p130, %p131
    %p133 = scmp.ne.s32.totalorder %s125, %s127
    %p134 = scmp.eq.s32.totalorder %s19, 1
    %p135 = por %p133, %p134
    %p136 = scmp.ne.s32.totalorder %s127, %s128
    %p137 = scmp.eq.s32.totalorder %s19, 0
    %p138 = por %p136, %p137
    %p139 = scmp.ne.s32.totalorder %s127, %s128
    %p140 = scmp.eq.s32.totalorder %s20, 1
    %p141 = por %p139, %p140
    %p143 = scmp.ne.s32.totalorder %s128, %s142
    %p144 = scmp.eq.s32.totalorder %s20, 0
    %p145 = por %p143, %p144
    %s146 = ssub.s32 %s22, %s29
    %p147 = scmp.eq.s32.totalorder %s146, 0
    %s149 = sadd.s32 %s148, 1
    %s150 = scalar_select %p147, %s148, %s149
    %p153 = pneg %p147
    %p154 = scmp.eq.s32.totalorder %s14, 1
    %p155 = por %p153, %p154
    %p156 = scmp.ne.s32.totalorder %s148, %s151
    %p157 = scmp.eq.s32.totalorder %s14, 0
    %p158 = por %p156, %p157
    %p159 = scmp.ne.s32.totalorder %s148, %s151
    %p160 = scmp.eq.s32.totalorder %s19, 1
    %p161 = por %p159, %p160
    %p162 = scmp.ne.s32.totalorder %s151, %s152
    %p163 = scmp.eq.s32.totalorder %s19, 0
    %p164 = por %p162, %p163
    %p165 = scmp.ne.s32.totalorder %s151, %s152
    %p166 = scmp.eq.s32.totalorder %s20, 1
    %p167 = por %p165, %p166
    %p169 = scmp.ne.s32.totalorder %s152, %s168
    %p170 = scmp.eq.s32.totalorder %s20, 0
    %p171 = por %p169, %p170
    %s172 = ssub.s32 %s21, %s33
    %s173 = ssub.s32 %s22, %s29
    %s174 = sor.u32 %s172, %s173
    %p175 = scmp.eq.s32.totalorder %s174, 0
    %s177 = sadd.s32 %s176, 1
    %s178 = scalar_select %p175, %s176, %s177
    %p181 = pneg %p175
    %p182 = scmp.eq.s32.totalorder %s14, 1
    %p183 = por %p181, %p182
    %p184 = scmp.ne.s32.totalorder %s176, %s179
    %p185 = scmp.eq.s32.totalorder %s14, 0
    %p186 = por %p184, %p185
    %p187 = scmp.ne.s32.totalorder %s176, %s179
    %p188 = scmp.eq.s32.totalorder %s19, 1
    %p189 = por %p187, %p188
    %p190 = scmp.ne.s32.totalorder %s179, %s180
    %p191 = scmp.eq.s32.totalorder %s19, 0
    %p192 = por %p190, %p191
    %p193 = scmp.ne.s32.totalorder %s179, %s180
    %p194 = scmp.eq.s32.totalorder %s20, 1
    %p195 = por %p193, %p194
    %p197 = scmp.ne.s32.totalorder %s180, %s196
    %p198 = scmp.eq.s32.totalorder %s20, 0
    %p199 = por %p197, %p198
    %s200 = ssub.s32 %s21, %s33
    %s201 = ssub.s32 %s22, %s29
    %s202 = sor.u32 %s200, %s201
    %p203 = scmp.eq.s32.totalorder %s202, 0
    %s205 = sadd.s32 %s204, 1
    %s206 = scalar_select %p203, %s204, %s205
    %p209 = pneg %p203
    %p210 = scmp.eq.s32.totalorder %s14, 1
    %p211 = por %p209, %p210
    %p212 = scmp.ne.s32.totalorder %s204, %s207
    %p213 = scmp.eq.s32.totalorder %s14, 0
    %p214 = por %p212, %p213
    %p215 = scmp.ne.s32.totalorder %s204, %s207
    %p216 = scmp.eq.s32.totalorder %s19, 1
    %p217 = por %p215, %p216
    %p218 = scmp.ne.s32.totalorder %s207, %s208
    %p219 = scmp.eq.s32.totalorder %s19, 0
    %p220 = por %p218, %p219
    %p221 = scmp.ne.s32.totalorder %s207, %s208
    %p222 = scmp.eq.s32.totalorder %s20, 1
    %p223 = por %p221, %p222
    %p225 = scmp.ne.s32.totalorder %s208, %s224
    %p226 = scmp.eq.s32.totalorder %s20, 0
    %p227 = por %p225, %p226
    %p228 = scmp.le.s32.totalorder 1, %s14
    %p229 = scmp.lt.s32.totalorder %s14, 3
    %p230 = pnand %p228, %p229
    %p231 = pneg %p230
    // Predicated region
    $region9: #{fcos_detector_inference.5} parent=5 // pred_check
      _
    $region10: #{fcos_detector_inference.5} parent=5 // pred_check_branch
      %233 = sbr.rel (%p230) target = $region12
    $region11: #{fcos_detector_inference.5} parent=5 // pred_region
      %s234 = ssub.s32 %s14, 1
      // Predicated region
      $region13: #{fcos_detector_inference.5} parent=11 // pred_check
        %p235 = pneg %p75
      $region14: #{fcos_detector_inference.5} parent=11 // pred_check_branch
        %237 = sbr.rel (%p235) target = $region16
      $region15: #{fcos_detector_inference.5} parent=11 // pred_region
        _
      $region16: #{fcos_detector_inference.5} parent=11 // pred_fallthru
        _
      // Predicated region
      $region17: #{fcos_detector_inference.5} parent=11 // pred_check
        %p238 = pneg %p96
      $region18: #{fcos_detector_inference.5} parent=11 // pred_check_branch
        %240 = sbr.rel (%p238) target = $region20
      $region19: #{fcos_detector_inference.5} parent=11 // pred_region
        _
      $region20: #{fcos_detector_inference.5} parent=11 // pred_fallthru
        _
      // Predicated region
      $region21: #{fcos_detector_inference.5} parent=11 // pred_check
        %p241 = pneg %p117
      $region22: #{fcos_detector_inference.5} parent=11 // pred_check_branch
        %243 = sbr.rel (%p241) target = $region24
      $region23: #{fcos_detector_inference.5} parent=11 // pred_region
        _
      $region24: #{fcos_detector_inference.5} parent=11 // pred_fallthru
        _
      // Predicated region
      $region25: #{fcos_detector_inference.5} parent=11 // pred_check
        %p244 = pneg %p138
      $region26: #{fcos_detector_inference.5} parent=11 // pred_check_branch
        %246 = sbr.rel (%p244) target = $region28
      $region27: #{fcos_detector_inference.5} parent=11 // pred_region
        _
      $region28: #{fcos_detector_inference.5} parent=11 // pred_fallthru
        _
      // Predicated region
      $region29: #{fcos_detector_inference.5} parent=11 // pred_check
        %p247 = pneg %p164
      $region30: #{fcos_detector_inference.5} parent=11 // pred_check_branch
        %249 = sbr.rel (%p247) target = $region32
      $region31: #{fcos_detector_inference.5} parent=11 // pred_region
        %p250 = scmp.lt.s32.totalorder %s24, 0
        %s251 = scalar_select %p250, %s24, 0
        %s252 = smul.addr %s251, 2
        %s253 = scalar_lea.vmem %s5, %s252
      $region32: #{fcos_detector_inference.5} parent=11 // pred_fallthru
        _
    $region12: #{fcos_detector_inference.5} parent=5 // pred_fallthru
      _
    %p254 = scmp.lt.s32.totalorder %s14, 2
    // Predicated region
    $region33: #{fcos_detector_inference.5} parent=5 // pred_check
      %p255 = pneg %p254
    $region34: #{fcos_detector_inference.5} parent=5 // pred_check_branch
      %257 = sbr.rel (%p255) target = $region36
    $region35: #{fcos_detector_inference.5} parent=5 // pred_region
      // Predicated region
      $region37: #{fcos_detector_inference.5} parent=35 // pred_check
        %p258 = pneg %p48
      $region38: #{fcos_detector_inference.5} parent=35 // pred_check_branch
        %260 = sbr.rel (%p258) target = $region40
      $region39: #{fcos_detector_inference.5} parent=35 // pred_region
        %p261 = scmp.lt.s32.totalorder %s21, 1
        %s262 = scalar_select %p261, %s21, 1
        %p263 = scmp.lt.s32.totalorder %s22, 0
        %s264 = scalar_select %p263, %s22, 0
        %s265 = smul.addr %s262, 2
        %s266 = sadd.s32 %s264, %s265
        %s267 = smul.addr %s266, 4
        %s268 = scalar_lea.vmem %s0, %s267
      $region40: #{fcos_detector_inference.5} parent=35 // pred_fallthru
        _
    $region36: #{fcos_detector_inference.5} parent=5 // pred_fallthru
      _
    %p269 = scmp.le.s32.totalorder 1, %s14
    %p270 = scmp.lt.s32.totalorder %s14, 3
    %p271 = pnand %p269, %p270
    %p272 = pneg %p271
    // Predicated region
    $region41: #{fcos_detector_inference.5} parent=5 // pred_check
      _
    $region42: #{fcos_detector_inference.5} parent=5 // pred_check_branch
      %274 = sbr.rel (%p271) target = $region44
    $region43: #{fcos_detector_inference.5} parent=5 // pred_region
      %s275 = ssub.s32 %s14, 1
      %p276 = scmp.lt.s32.totalorder %s23, 1
      %s277 = scalar_select %p276, %s23, 1
      %p278 = scmp.lt.s32.totalorder %s24, 0
      %s279 = scalar_select %p278, %s24, 0
      %s280 = smul.addr %s277, 2
      %s281 = sadd.s32 %s279, %s280
      %s282 = smul.addr %s281, 4
      %s283 = scalar_lea.vmem %s0, %s282
      %p284 = pneg %p54
      %p285 = pneg %p51
      %p286 = pneg %p75
      %p287 = pneg %p72
      %p288 = pneg %p96
      %p289 = pneg %p93
      %p290 = pneg %p117
      %p291 = pneg %p114
      %p292 = pneg %p138
      %p293 = pneg %p135
      %p294 = scmp.lt.s32.totalorder %s24, 0
      %s295 = scalar_select %p294, %s24, 0
      %s296 = smul.addr %s295, 2
      %s297 = scalar_lea.vmem %s5, %s296
      %p298 = pneg %p164
      %p299 = pneg %p161
      %p300 = pneg %p192
      %p301 = pneg %p189
      %p302 = scmp.lt.s32.totalorder %s23, 1
      %s303 = scalar_select %p302, %s23, 1
      %p304 = scmp.lt.s32.totalorder %s24, 0
      %s305 = scalar_select %p304, %s24, 0
      %s306 = smul.addr %s303, 2
      %s307 = sadd.s32 %s305, %s306
      %s308 = smul.addr %s307, 4
      %s309 = scalar_lea.vmem %s6, %s308
      %p310 = pneg %p220
      %p311 = pneg %p217
      %p312 = scmp.lt.s32.totalorder %s23, 1
      %s313 = scalar_select %p312, %s23, 1
      %p314 = scmp.lt.s32.totalorder %s24, 0
      %s315 = scalar_select %p314, %s24, 0
      %s316 = sadd.s32 %s315, %s313
      %s317 = smul.addr %s316, 8
      %s318 = scalar_lea.vmem %s7, %s317
      %p319 = scmp.lt.s32.totalorder %s23, 1
      %s320 = scalar_select %p319, %s23, 1
      %p321 = scmp.lt.s32.totalorder %s24, 0
      %s322 = scalar_select %p321, %s24, 0
      %s323 = smul.addr %s320, 2
      %s324 = sadd.s32 %s322, %s323
      %s325 = smul.addr %s324, 4
      %s326 = scalar_lea.vmem %s0, %s325
      %p327 = scmp.lt.s32.totalorder %s24, 0
      %s328 = scalar_select %p327, %s24, 0
      %s329 = smul.addr %s328, 2
      %s330 = scalar_lea.vmem %s5, %s329
      %p331 = scmp.lt.s32.totalorder %s23, 1
      %s332 = scalar_select %p331, %s23, 1
      %p333 = scmp.lt.s32.totalorder %s24, 0
      %s334 = scalar_select %p333, %s24, 0
      %s335 = smul.addr %s332, 2
      %s336 = sadd.s32 %s334, %s335
      %s337 = smul.addr %s336, 4
      %s338 = scalar_lea.vmem %s6, %s337
      %p339 = scmp.lt.s32.totalorder %s23, 1
      %s340 = scalar_select %p339, %s23, 1
      %p341 = scmp.lt.s32.totalorder %s24, 0
      %s342 = scalar_select %p341, %s24, 0
      %s343 = sadd.s32 %s342, %s340
      %s344 = smul.addr %s343, 8
      %s345 = scalar_lea.vmem %s7, %s344
      %v347 = vld [vmem:[%s1] sm:$0xf]
      %v348 = vld [vmem:[%s1 + $0x4] sm:$0xf]
      %v349 = vld [vmem:[%s326] sm:$0xf]
      %v350 = vld [vmem:[%s326 + $0x4] sm:$0xf]
      %v351 = vld [vmem:[%s2] sm:$0xff]
      %v352 = vld [vmem:[%s2 + $0x8] sm:$0xff]
      %354 = vset.pattern.permute.xlu0 0
      %355 = vperm.xlu0 %354, %v351
      %v356 = vpop.permute.xlu0 %355
      %359 = vset.pattern.permute.xlu0 0
      %360 = vperm.xlu0 %359, %v352
      %v361 = vpop.permute.xlu0 %360
      %v365 = vunpack.c.l.b16 %v347
      %v366 = vunpack.c.l.b16 %v348
      %v367 = vpack.c.b16 %v366, %v365
      %v370 = vunpack.c.l.b16 %v349
      %v371 = vunpack.c.l.b16 %v350
      %v372 = vpack.c.b16 %v371, %v370
      %vm374 = vcmask 130048
      %v376 = vsel %vm374, %v367, 0
      %378 = vmatpush.bf16.msra.mxu0 0
      %379 = vmatpush.bf16.msra.mxu0 0
      %380 = vmatpush.bf16.msra.mxu0 0
      %381 = vmatpush.bf16.msra.mxu0 0
      %382 = vmatpush.bf16.msra.mxu0 0
      %383 = vmatpush.bf16.msra.mxu0 0
      %384 = vmatpush.bf16.msra.mxu0 0
      %385 = vmatpush.bf16.msra.mxu0 %v372
      %386 = vmatmul.bf16.gmra.mxu0 %v376
      %v387 = vpop.f32.mrf.mxu0
      %v388 = vadd.f32 %v356, %v387
      %v389 = vpop.f32.mrf.mxu0
      %v390 = vadd.f32 %v361, %v389
      %391 = vdwg.mxu0
      %v392 = vmax.f32 %v388, 0.0
      %v393 = vmax.f32 %v390, 0.0
      %v394 = vpack.c.bf16 %v392, %v392
      %v395 = vpack.c.bf16 %v393, %v393
      %vm396 = vcmask 519168
      %397 = vst.msk [vmem:[%s338] sm:$0xf] %vm396, %v394
      %398 = vst.msk [vmem:[%s338 + $0x4] sm:$0xf] %vm396, %v395
      %v399 = vld [vmem:[%s3] sm:$0xf]
      %v400 = vld [vmem:[%s3 + $0x4] sm:$0x1]
      %v401 = vld [vmem:[%s4] sm:$0xff]
      %v402 = vld [vmem:[%s4 + $0x8] sm:$0x1]
      %404 = vset.pattern.permute.xlu0 0
      %405 = vperm.xlu0 %404, %v401
      %v406 = vpop.permute.xlu0 %405
      %409 = vset.pattern.permute.xlu0 0
      %410 = vperm.xlu0 %409, %v402
      %v411 = vpop.permute.xlu0 %410
      %v415 = vunpack.c.l.b16 %v399
      %v416 = vunpack.c.l.b16 %v400
      %v417 = vpack.c.b16 %v416, %v415
      %v420 = vunpack.c.l.b16 %v394
      %v421 = vunpack.c.l.b16 %v395
      %v422 = vpack.c.b16 %v421, %v420
      %v425 = vsel %vm374, %v417, 0
      %427 = vmatpush.bf16.msra.mxu0 0
      %428 = vmatpush.bf16.msra.mxu0 0
      %429 = vmatpush.bf16.msra.mxu0 0
      %430 = vmatpush.bf16.msra.mxu0 0
      %431 = vmatpush.bf16.msra.mxu0 0
      %432 = vmatpush.bf16.msra.mxu0 0
      %433 = vmatpush.bf16.msra.mxu0 0
      %434 = vmatpush.bf16.msra.mxu0 %v422
      %435 = vmatmul.bf16.gmra.mxu0 %v425
      %v436 = vpop.f32.mrf.mxu0
      %v437 = vadd.f32 %v406, %v436
      %v438 = vpop.f32.mrf.mxu0
      %v439 = vadd.f32 %v411, %v438
      %440 = vdwg.mxu0
      %v441 = vxor.u32 %v437, 2147483648
      %v442 = vmul.f32 %v441, 1.442695
      %v443 = vpow.pop %v442
      %v444 = vadd.f32 %v443, 1.0
      %v445 = vrcp.pop %v444
      %v446 = vmul.f32 %v444, %v445
      %v447 = vsub.f32 1.0, %v446
      %v448 = vmul.f32 %v445, %v447
      %v449 = vadd.f32 %v445, %v448
      %vm450 = vweird.f32 %v444
      %vm451 = vweird.f32 %v445
      %vm452 = vmor %vm450, %vm451
      %v453 = vsel %vm452, %v445, %v449
      %v454 = vand.u32 2147483647, %v444
      %vm455 = vcmp.eq.f32.partialorder %v454, 8.507059e+37
      %v456 = vand.u32 %v444, 2147483648
      %v457 = vor.u32 1.1754944e-38, %v456
      %v458 = vsel %vm455, %v457, %v453
      %v459 = vmul.f32 1.0, %v458
      %v460 = vmul.f32 %v437, 1.442695
      %v461 = vpow.pop %v460
      %v462 = vmul.f32 %v439, 1.442695
      %v463 = vpow.pop %v462
      %v464 = vsel %vm396, %v459, -inf
      %v465 = vrot.slane %v464, 4
      %v466 = vmax.f32 %v464, %v465
      %v467 = vrot.slane %v466, 2
      %v468 = vmax.f32 %v466, %v467
      %v469 = vrot.slane %v468, 1
      %v470 = vmax.f32 %v468, %v469
      %v471 = vlaneseq
      %v472 = vshrl.u32 %v471, 7
      %vm473 = vcmp.eq.f32.partialorder %v459, %v470
      %v474 = vsel %vm473, %v472, 4
      %v475 = vsel %vm396, %v474, 2147483647
      %v476 = vrot.slane %v475, 4
      %vm477 = vcmp.lt.s32.totalorder %v475, %v476
      %v478 = vsel %vm477, %v475, %v476
      %v479 = vrot.slane %v478, 2
      %vm480 = vcmp.lt.s32.totalorder %v478, %v479
      %v481 = vsel %vm480, %v478, %v479
      %v482 = vrot.slane %v481, 1
      %vm483 = vcmp.lt.s32.totalorder %v481, %v482
      %v484 = vsel %vm483, %v481, %v482
      %v485 = vadd.s32 %v484, 1
      %v486 = vcvt.s32.f32 %v485
      %v487 = vmul.f32 %v470, %v459
      %v488 = vrsqrt.pop %v487
      %v489 = vmul.f32 %v488, %v487
      %v490 = vmul.f32 %v489, %v488
      %v491 = vmul.f32 0.5, %v490
      %v492 = vsub.f32 1.5, %v491
      %v493 = vmul.f32 %v488, %v492
      %v494 = vmul.f32 %v487, %v493
      %vm495 = vcmp.eq.f32.partialorder %v487, inf
      %v496 = vsel %vm495, %v487, %v494
      %vm497 = vcmp.eq.f32.partialorder %v487, 0.0
      %v498 = vand.u32 %v487, 2147483648
      %v499 = vsel %vm497, %v498, %v496
      %s500 = smul.u32 %s24, 64
      %v501 = vlaneseq
      %v502 = vand.u32 %v501, 127
      %v503 = vstv %s500
      %v504 = vadd.s32 %v503, %v502
      %vm505 = vcmp.lt.s32.totalorder %v504, 64
      %v506 = vsel %vm505, %v499, -1.0
      %v507 = vld [vmem:[%s330] sm:$0x1]
      %v508 = vld [vmem:[%s330 + $0x1] sm:$0x1]
      %v510 = vrot.slane %v461, 5
      %v512 = vsub.f32 %v507, %v510
      %v513 = vmax.f32 %v512, 0.0
      %v514 = vmin.f32 %v513, 31.0
      %v515 = vrot.slane %v461, 6
      %v517 = vsub.f32 %v508, %v515
      %v518 = vmax.f32 %v517, 0.0
      %v519 = vmin.f32 %v518, 31.0
      %v520 = vrot.slane %v461, 7
      %v522 = vadd.f32 %v507, %v520
      %v523 = vmax.f32 %v522, 0.0
      %v524 = vmin.f32 %v523, 31.0
      %v525 = vadd.f32 %v508, %v463
      %v526 = vmax.f32 %v525, 0.0
      %v527 = vmin.f32 %v526, 31.0
      %v529 = vrot.slane %v506, 4
      %v532 = vrot.slane %v514, 6
      %v535 = vrot.slane %v519, 5
      %v538 = vrot.slane %v524, 4
      %v541 = vrot.slane %v527, 3
      %vm543 = vcmask 1040384
      %v544 = vsel %vm543, %v529, %v486
      %vm545 = vcmask 1041408
      %v546 = vsel %vm545, %v544, %v532
      %vm547 = vcmask 1042432
      %v548 = vsel %vm547, %v546, %v535
      %vm549 = vcmask 1043456
      %v550 = vsel %vm549, %v548, %v538
      %vm551 = vcmask 1044480
      %v552 = vsel %vm551, %v550, %v541
      %vm553 = vcmask 1045504
      %v554 = vsel %vm553, %v552, 0.0
      %vm555 = vcmask 523264
      %556 = vst.msk [vmem:[%s345] sm:$0xff] %vm555, %v554
      %p557 = scmp.lt.s32.totalorder %s23, 1
      %s558 = scalar_select %p557, %s23, 1
      %p559 = scmp.lt.s32.totalorder %s24, 0
      %s560 = scalar_select %p559, %s24, 0
      %s561 = smul.addr %s558, 2
      %s562 = sadd.s32 %s560, %s561
      %s563 = smul.addr %s562, 4
      %s564 = scalar_lea.vmem %s6, %s563
      %p565 = scmp.lt.s32.totalorder %s23, 1
      %s566 = scalar_select %p565, %s23, 1
      %p567 = scmp.lt.s32.totalorder %s24, 0
      %s568 = scalar_select %p567, %s24, 0
      %s569 = sadd.s32 %s568, %s566
      %s570 = smul.addr %s569, 8
      %s571 = scalar_lea.vmem %s7, %s570
      // Predicated region
      $region45: #{fcos_detector_inference.5} parent=43 // pred_check
        %p572 = pneg %p189
      $region46: #{fcos_detector_inference.5} parent=43 // pred_check_branch
        %574 = sbr.rel (%p572) target = $region48
      $region47: #{fcos_detector_inference.5} parent=43 // pred_region
        _
      $region48: #{fcos_detector_inference.5} parent=43 // pred_fallthru
        _
      // Predicated region
      $region49: #{fcos_detector_inference.5} parent=43 // pred_check
        %p575 = pneg %p217
      $region50: #{fcos_detector_inference.5} parent=43 // pred_check_branch
        %577 = sbr.rel (%p575) target = $region52
      $region51: #{fcos_detector_inference.5} parent=43 // pred_region
        _
      $region52: #{fcos_detector_inference.5} parent=43 // pred_fallthru
        _
    $region44: #{fcos_detector_inference.5} parent=5 // pred_fallthru
      _
    %p578 = scmp.le.s32.totalorder 2, %s14
    // Predicated region
    $region53: #{fcos_detector_inference.5} parent=5 // pred_check
      %p579 = pneg %p578
    $region54: #{fcos_detector_inference.5} parent=5 // pred_check_branch
      %581 = sbr.rel (%p579) target = $region56
    $region55: #{fcos_detector_inference.5} parent=5 // pred_region
      %s582 = ssub.s32 %s14, 2
      // Predicated region
      $region57: #{fcos_detector_inference.5} parent=55 // pred_check
        %p583 = pneg %p195
      $region58: #{fcos_detector_inference.5} parent=55 // pred_check_branch
        %585 = sbr.rel (%p583) target = $region60
      $region59: #{fcos_detector_inference.5} parent=55 // pred_region
        %p586 = scmp.lt.s32.totalorder %s25, 1
        %s587 = scalar_select %p586, %s25, 1
        %p588 = scmp.lt.s32.totalorder %s26, 0
        %s589 = scalar_select %p588, %s26, 0
        %s590 = smul.addr %s587, 2
        %s591 = sadd.s32 %s589, %s590
        %s592 = smul.addr %s591, 4
        %s593 = scalar_lea.vmem %s6, %s592
      $region60: #{fcos_detector_inference.5} parent=55 // pred_fallthru
        _
      // Predicated region
      $region61: #{fcos_detector_inference.5} parent=55 // pred_check
        %p594 = pneg %p223
      $region62: #{fcos_detector_inference.5} parent=55 // pred_check_branch
        %596 = sbr.rel (%p594) target = $region64
      $region63: #{fcos_detector_inference.5} parent=55 // pred_region
        %p597 = scmp.lt.s32.totalorder %s25, 1
        %s598 = scalar_select %p597, %s25, 1
        %p599 = scmp.lt.s32.totalorder %s26, 0
        %s600 = scalar_select %p599, %s26, 0
        %s601 = sadd.s32 %s600, %s598
        %s602 = smul.addr %s601, 8
        %s603 = scalar_lea.vmem %s7, %s602
      $region64: #{fcos_detector_inference.5} parent=55 // pred_fallthru
        _
    $region56: #{fcos_detector_inference.5} parent=5 // pred_fallthru
      _
  $region6: #{fcos_detector_inference.5} parent=0 // loop_footer
    %s18 = sadd.s32 1, %s14
  $region7: #{fcos_detector_inference.5} parent=0 // loop_footer_branch
    %13 = sbr.rel target = $region3
  $region8: #{fcos_detector_inference.5} parent=0 // loop_exit
    _

// kernel: fcos_detector_inference.6
$region0: #{fcos_detector_inference.6}
  #allocation0 [shape = 'u32[]', space=smem, size = 0x4, offset = 0x4, fixed_abs, tag = 'smem constant byte address 0x4 - core index']
  #allocation1 [shape = 'u32[72,128]{1,0:T(1,128)}', space=vmem, size = 0x9000, scoped, tag = 'internal scratch']
  %s0 = inlined_call_operand.vmem [shape: bf16[2,16,16], index: 0, kind: input, shape index: {}]
  %s1 = inlined_call_operand.vmem [shape: bf16[16,16], index: 1, kind: input, shape index: {}]
  %s2 = inlined_call_operand.vmem [shape: f32[16,1], index: 2, kind: input, shape index: {}]
  %s3 = inlined_call_operand.vmem [shape: bf16[9,16], index: 3, kind: input, shape index: {}]
  %s4 = inlined_call_operand.vmem [shape: f32[9,1], index: 4, kind: input, shape index: {}]
  %s5 = inlined_call_operand.vmem [shape: f32[2,16], index: 5, kind: input, shape index: {}]
  %s6 = inlined_call_operand.vmem [shape: bf16[2,16,16], index: 6, kind: output, shape index: {0}]
  %s7 = inlined_call_operand.vmem [shape: f32[2,8,16], index: 7, kind: output, shape index: {1}]
  %8 = xla_tuple %s6, %s7
  %s9 = sld [smem:[#allocation0]]
  $region65: #{fcos_detector_inference.6} parent=0
    _
  %s11 = ssub.s32 1, %s9
  %s12 = scalar_select 0, %s11, %s9
  loop: start=0, step=1, limit=4
  $region2: #{fcos_detector_inference.6} parent=0 // loop_pre_header
    _
  $region3: #{fcos_detector_inference.6} parent=0 // loop_header
    %s14 = sphi 0, %s18
    %p15 = scmp.ge.s32.totalorder %s14, 4
    %s21 = sphi 0, %s33
    %s22 = sphi 0, %s29
    %s23 = sphi 0, %s21
    %s24 = sphi 0, %s22
    %s25 = sphi 0, %s23
    %s26 = sphi 0, %s24
    %s38 = sphi 0, %s40
    %s41 = sphi 0, %s38
    %s42 = sphi 0, %s41
    %s58 = sphi 0, %s42
    %s62 = sphi 0, %s62
    %s64 = sphi 0, %s62
    %s65 = sphi 0, %s64
    %s79 = sphi 0, %s65
    %s83 = sphi 0, %s83
    %s85 = sphi 0, %s83
    %s86 = sphi 0, %s85
    %s100 = sphi 0, %s86
    %s104 = sphi 0, %s104
    %s106 = sphi 0, %s104
    %s107 = sphi 0, %s106
    %s121 = sphi 0, %s107
    %s125 = sphi 0, %s125
    %s127 = sphi 0, %s125
    %s128 = sphi 0, %s127
    %s142 = sphi 0, %s128
    %s148 = sphi 0, %s150
    %s151 = sphi 0, %s148
    %s152 = sphi 0, %s151
    %s168 = sphi 0, %s152
    %s176 = sphi 0, %s178
    %s179 = sphi 0, %s176
    %s180 = sphi 0, %s179
    %s196 = sphi 0, %s180
    %s204 = sphi 0, %s206
    %s207 = sphi 0, %s204
    %s208 = sphi 0, %s207
    %s224 = sphi 0, %s208
  $region4: #{fcos_detector_inference.6} parent=0 // loop_header_branch
    %17 = sbr.rel (%p15) target = $region8
  $region5: #{fcos_detector_inference.6} parent=0 // loop_body
    %s19 = ssub.s32 %s14, 1
    %s20 = ssub.s32 %s14, 2
    %s27 = sadd.s32 1, %s22
    %p28 = scmp.ge.s32.totalorder %s27, 1
    %s29 = scalar_select %p28, 0, %s27
    %s30 = sadd.s32 1, %s21
    %s31 = scalar_select %p28, %s30, %s21
    %p32 = scmp.ge.s32.totalorder %s31, 2
    %s33 = scalar_select %p32, 0, %s31
    %s34 = ssub.s32 %s21, %s33
    %s35 = ssub.s32 %s22, %s29
    %s36 = sor.u32 %s34, %s35
    %p37 = scmp.eq.s32.totalorder %s36, 0
    %s39 = sadd.s32 %s38, 1
    %s40 = scalar_select %p37, %s38, %s39
    %p43 = pneg %p37
    %p44 = scmp.eq.s32.totalorder %s14, 1
    %p45 = por %p43, %p44
    %p46 = scmp.ne.s32.totalorder %s38, %s41
    %p47 = scmp.eq.s32.totalorder %s14, 0
    %p48 = por %p46, %p47
    %p49 = scmp.ne.s32.totalorder %s38, %s41
    %p50 = scmp.eq.s32.totalorder %s19, 1
    %p51 = por %p49, %p50
    %p52 = scmp.ne.s32.totalorder %s41, %s42
    %p53 = scmp.eq.s32.totalorder %s19, 0
    %p54 = por %p52, %p53
    %p55 = scmp.ne.s32.totalorder %s41, %s42
    %p56 = scmp.eq.s32.totalorder %s20, 1
    %p57 = por %p55, %p56
    %p59 = scmp.ne.s32.totalorder %s42, %s58
    %p60 = scmp.eq.s32.totalorder %s20, 0
    %p61 = por %p59, %p60
    %s63 = sadd.s32 %s62, 1
    %p66 = scmp.eq.s32.totalorder %s14, 1
    %p67 = scmp.ne.s32.totalorder %s62, %s64
    %p68 = scmp.eq.s32.totalorder %s14, 0
    %p69 = por %p67, %p68
    %p70 = scmp.ne.s32.totalorder %s62, %s64
    %p71 = scmp.eq.s32.totalorder %s19, 1
    %p72 = por %p70, %p71
    %p73 = scmp.ne.s32.totalorder %s64, %s65
    %p74 = scmp.eq.s32.totalorder %s19, 0
    %p75 = por %p73, %p74
    %p76 = scmp.ne.s32.totalorder %s64, %s65
    %p77 = scmp.eq.s32.totalorder %s20, 1
    %p78 = por %p76, %p77
    %p80 = scmp.ne.s32.totalorder %s65, %s79
    %p81 = scmp.eq.s32.totalorder %s20, 0
    %p82 = por %p80, %p81
    %s84 = sadd.s32 %s83, 1
    %p87 = scmp.eq.s32.totalorder %s14, 1
    %p88 = scmp.ne.s32.totalorder %s83, %s85
    %p89 = scmp.eq.s32.totalorder %s14, 0
    %p90 = por %p88, %p89
    %p91 = scmp.ne.s32.totalorder %s83, %s85
    %p92 = scmp.eq.s32.totalorder %s19, 1
    %p93 = por %p91, %p92
    %p94 = scmp.ne.s32.totalorder %s85, %s86
    %p95 = scmp.eq.s32.totalorder %s19, 0
    %p96 = por %p94, %p95
    %p97 = scmp.ne.s32.totalorder %s85, %s86
    %p98 = scmp.eq.s32.totalorder %s20, 1
    %p99 = por %p97, %p98
    %p101 = scmp.ne.s32.totalorder %s86, %s100
    %p102 = scmp.eq.s32.totalorder %s20, 0
    %p103 = por %p101, %p102
    %s105 = sadd.s32 %s104, 1
    %p108 = scmp.eq.s32.totalorder %s14, 1
    %p109 = scmp.ne.s32.totalorder %s104, %s106
    %p110 = scmp.eq.s32.totalorder %s14, 0
    %p111 = por %p109, %p110
    %p112 = scmp.ne.s32.totalorder %s104, %s106
    %p113 = scmp.eq.s32.totalorder %s19, 1
    %p114 = por %p112, %p113
    %p115 = scmp.ne.s32.totalorder %s106, %s107
    %p116 = scmp.eq.s32.totalorder %s19, 0
    %p117 = por %p115, %p116
    %p118 = scmp.ne.s32.totalorder %s106, %s107
    %p119 = scmp.eq.s32.totalorder %s20, 1
    %p120 = por %p118, %p119
    %p122 = scmp.ne.s32.totalorder %s107, %s121
    %p123 = scmp.eq.s32.totalorder %s20, 0
    %p124 = por %p122, %p123
    %s126 = sadd.s32 %s125, 1
    %p129 = scmp.eq.s32.totalorder %s14, 1
    %p130 = scmp.ne.s32.totalorder %s125, %s127
    %p131 = scmp.eq.s32.totalorder %s14, 0
    %p132 = por %p130, %p131
    %p133 = scmp.ne.s32.totalorder %s125, %s127
    %p134 = scmp.eq.s32.totalorder %s19, 1
    %p135 = por %p133, %p134
    %p136 = scmp.ne.s32.totalorder %s127, %s128
    %p137 = scmp.eq.s32.totalorder %s19, 0
    %p138 = por %p136, %p137
    %p139 = scmp.ne.s32.totalorder %s127, %s128
    %p140 = scmp.eq.s32.totalorder %s20, 1
    %p141 = por %p139, %p140
    %p143 = scmp.ne.s32.totalorder %s128, %s142
    %p144 = scmp.eq.s32.totalorder %s20, 0
    %p145 = por %p143, %p144
    %s146 = ssub.s32 %s22, %s29
    %p147 = scmp.eq.s32.totalorder %s146, 0
    %s149 = sadd.s32 %s148, 1
    %s150 = scalar_select %p147, %s148, %s149
    %p153 = pneg %p147
    %p154 = scmp.eq.s32.totalorder %s14, 1
    %p155 = por %p153, %p154
    %p156 = scmp.ne.s32.totalorder %s148, %s151
    %p157 = scmp.eq.s32.totalorder %s14, 0
    %p158 = por %p156, %p157
    %p159 = scmp.ne.s32.totalorder %s148, %s151
    %p160 = scmp.eq.s32.totalorder %s19, 1
    %p161 = por %p159, %p160
    %p162 = scmp.ne.s32.totalorder %s151, %s152
    %p163 = scmp.eq.s32.totalorder %s19, 0
    %p164 = por %p162, %p163
    %p165 = scmp.ne.s32.totalorder %s151, %s152
    %p166 = scmp.eq.s32.totalorder %s20, 1
    %p167 = por %p165, %p166
    %p169 = scmp.ne.s32.totalorder %s152, %s168
    %p170 = scmp.eq.s32.totalorder %s20, 0
    %p171 = por %p169, %p170
    %s172 = ssub.s32 %s21, %s33
    %s173 = ssub.s32 %s22, %s29
    %s174 = sor.u32 %s172, %s173
    %p175 = scmp.eq.s32.totalorder %s174, 0
    %s177 = sadd.s32 %s176, 1
    %s178 = scalar_select %p175, %s176, %s177
    %p181 = pneg %p175
    %p182 = scmp.eq.s32.totalorder %s14, 1
    %p183 = por %p181, %p182
    %p184 = scmp.ne.s32.totalorder %s176, %s179
    %p185 = scmp.eq.s32.totalorder %s14, 0
    %p186 = por %p184, %p185
    %p187 = scmp.ne.s32.totalorder %s176, %s179
    %p188 = scmp.eq.s32.totalorder %s19, 1
    %p189 = por %p187, %p188
    %p190 = scmp.ne.s32.totalorder %s179, %s180
    %p191 = scmp.eq.s32.totalorder %s19, 0
    %p192 = por %p190, %p191
    %p193 = scmp.ne.s32.totalorder %s179, %s180
    %p194 = scmp.eq.s32.totalorder %s20, 1
    %p195 = por %p193, %p194
    %p197 = scmp.ne.s32.totalorder %s180, %s196
    %p198 = scmp.eq.s32.totalorder %s20, 0
    %p199 = por %p197, %p198
    %s200 = ssub.s32 %s21, %s33
    %s201 = ssub.s32 %s22, %s29
    %s202 = sor.u32 %s200, %s201
    %p203 = scmp.eq.s32.totalorder %s202, 0
    %s205 = sadd.s32 %s204, 1
    %s206 = scalar_select %p203, %s204, %s205
    %p209 = pneg %p203
    %p210 = scmp.eq.s32.totalorder %s14, 1
    %p211 = por %p209, %p210
    %p212 = scmp.ne.s32.totalorder %s204, %s207
    %p213 = scmp.eq.s32.totalorder %s14, 0
    %p214 = por %p212, %p213
    %p215 = scmp.ne.s32.totalorder %s204, %s207
    %p216 = scmp.eq.s32.totalorder %s19, 1
    %p217 = por %p215, %p216
    %p218 = scmp.ne.s32.totalorder %s207, %s208
    %p219 = scmp.eq.s32.totalorder %s19, 0
    %p220 = por %p218, %p219
    %p221 = scmp.ne.s32.totalorder %s207, %s208
    %p222 = scmp.eq.s32.totalorder %s20, 1
    %p223 = por %p221, %p222
    %p225 = scmp.ne.s32.totalorder %s208, %s224
    %p226 = scmp.eq.s32.totalorder %s20, 0
    %p227 = por %p225, %p226
    %p228 = scmp.le.s32.totalorder 1, %s14
    %p229 = scmp.lt.s32.totalorder %s14, 3
    %p230 = pnand %p228, %p229
    %p231 = pneg %p230
    // Predicated region
    $region9: #{fcos_detector_inference.6} parent=5 // pred_check
      _
    $region10: #{fcos_detector_inference.6} parent=5 // pred_check_branch
      %233 = sbr.rel (%p230) target = $region12
    $region11: #{fcos_detector_inference.6} parent=5 // pred_region
      %s234 = ssub.s32 %s14, 1
      // Predicated region
      $region13: #{fcos_detector_inference.6} parent=11 // pred_check
        %p235 = pneg %p75
      $region14: #{fcos_detector_inference.6} parent=11 // pred_check_branch
        %237 = sbr.rel (%p235) target = $region16
      $region15: #{fcos_detector_inference.6} parent=11 // pred_region
        _
      $region16: #{fcos_detector_inference.6} parent=11 // pred_fallthru
        _
      // Predicated region
      $region17: #{fcos_detector_inference.6} parent=11 // pred_check
        %p238 = pneg %p96
      $region18: #{fcos_detector_inference.6} parent=11 // pred_check_branch
        %240 = sbr.rel (%p238) target = $region20
      $region19: #{fcos_detector_inference.6} parent=11 // pred_region
        _
      $region20: #{fcos_detector_inference.6} parent=11 // pred_fallthru
        _
      // Predicated region
      $region21: #{fcos_detector_inference.6} parent=11 // pred_check
        %p241 = pneg %p117
      $region22: #{fcos_detector_inference.6} parent=11 // pred_check_branch
        %243 = sbr.rel (%p241) target = $region24
      $region23: #{fcos_detector_inference.6} parent=11 // pred_region
        _
      $region24: #{fcos_detector_inference.6} parent=11 // pred_fallthru
        _
      // Predicated region
      $region25: #{fcos_detector_inference.6} parent=11 // pred_check
        %p244 = pneg %p138
      $region26: #{fcos_detector_inference.6} parent=11 // pred_check_branch
        %246 = sbr.rel (%p244) target = $region28
      $region27: #{fcos_detector_inference.6} parent=11 // pred_region
        _
      $region28: #{fcos_detector_inference.6} parent=11 // pred_fallthru
        _
      // Predicated region
      $region29: #{fcos_detector_inference.6} parent=11 // pred_check
        %p247 = pneg %p164
      $region30: #{fcos_detector_inference.6} parent=11 // pred_check_branch
        %249 = sbr.rel (%p247) target = $region32
      $region31: #{fcos_detector_inference.6} parent=11 // pred_region
        %p250 = scmp.lt.s32.totalorder %s24, 0
        %s251 = scalar_select %p250, %s24, 0
        %s252 = smul.addr %s251, 2
        %s253 = scalar_lea.vmem %s5, %s252
      $region32: #{fcos_detector_inference.6} parent=11 // pred_fallthru
        _
    $region12: #{fcos_detector_inference.6} parent=5 // pred_fallthru
      _
    %p254 = scmp.lt.s32.totalorder %s14, 2
    // Predicated region
    $region33: #{fcos_detector_inference.6} parent=5 // pred_check
      %p255 = pneg %p254
    $region34: #{fcos_detector_inference.6} parent=5 // pred_check_branch
      %257 = sbr.rel (%p255) target = $region36
    $region35: #{fcos_detector_inference.6} parent=5 // pred_region
      // Predicated region
      $region37: #{fcos_detector_inference.6} parent=35 // pred_check
        %p258 = pneg %p48
      $region38: #{fcos_detector_inference.6} parent=35 // pred_check_branch
        %260 = sbr.rel (%p258) target = $region40
      $region39: #{fcos_detector_inference.6} parent=35 // pred_region
        %p261 = scmp.lt.s32.totalorder %s21, 1
        %s262 = scalar_select %p261, %s21, 1
        %p263 = scmp.lt.s32.totalorder %s22, 0
        %s264 = scalar_select %p263, %s22, 0
        %s265 = smul.addr %s262, 2
        %s266 = sadd.s32 %s264, %s265
        %s267 = smul.addr %s266, 4
        %s268 = scalar_lea.vmem %s0, %s267
      $region40: #{fcos_detector_inference.6} parent=35 // pred_fallthru
        _
    $region36: #{fcos_detector_inference.6} parent=5 // pred_fallthru
      _
    %p269 = scmp.le.s32.totalorder 1, %s14
    %p270 = scmp.lt.s32.totalorder %s14, 3
    %p271 = pnand %p269, %p270
    %p272 = pneg %p271
    // Predicated region
    $region41: #{fcos_detector_inference.6} parent=5 // pred_check
      _
    $region42: #{fcos_detector_inference.6} parent=5 // pred_check_branch
      %274 = sbr.rel (%p271) target = $region44
    $region43: #{fcos_detector_inference.6} parent=5 // pred_region
      %s275 = ssub.s32 %s14, 1
      %p276 = scmp.lt.s32.totalorder %s23, 1
      %s277 = scalar_select %p276, %s23, 1
      %p278 = scmp.lt.s32.totalorder %s24, 0
      %s279 = scalar_select %p278, %s24, 0
      %s280 = smul.addr %s277, 2
      %s281 = sadd.s32 %s279, %s280
      %s282 = smul.addr %s281, 4
      %s283 = scalar_lea.vmem %s0, %s282
      %p284 = pneg %p54
      %p285 = pneg %p51
      %p286 = pneg %p75
      %p287 = pneg %p72
      %p288 = pneg %p96
      %p289 = pneg %p93
      %p290 = pneg %p117
      %p291 = pneg %p114
      %p292 = pneg %p138
      %p293 = pneg %p135
      %p294 = scmp.lt.s32.totalorder %s24, 0
      %s295 = scalar_select %p294, %s24, 0
      %s296 = smul.addr %s295, 2
      %s297 = scalar_lea.vmem %s5, %s296
      %p298 = pneg %p164
      %p299 = pneg %p161
      %p300 = pneg %p192
      %p301 = pneg %p189
      %p302 = scmp.lt.s32.totalorder %s23, 1
      %s303 = scalar_select %p302, %s23, 1
      %p304 = scmp.lt.s32.totalorder %s24, 0
      %s305 = scalar_select %p304, %s24, 0
      %s306 = smul.addr %s303, 2
      %s307 = sadd.s32 %s305, %s306
      %s308 = smul.addr %s307, 4
      %s309 = scalar_lea.vmem %s6, %s308
      %p310 = pneg %p220
      %p311 = pneg %p217
      %p312 = scmp.lt.s32.totalorder %s23, 1
      %s313 = scalar_select %p312, %s23, 1
      %p314 = scmp.lt.s32.totalorder %s24, 0
      %s315 = scalar_select %p314, %s24, 0
      %s316 = sadd.s32 %s315, %s313
      %s317 = smul.addr %s316, 8
      %s318 = scalar_lea.vmem %s7, %s317
      %p319 = scmp.lt.s32.totalorder %s23, 1
      %s320 = scalar_select %p319, %s23, 1
      %p321 = scmp.lt.s32.totalorder %s24, 0
      %s322 = scalar_select %p321, %s24, 0
      %s323 = smul.addr %s320, 2
      %s324 = sadd.s32 %s322, %s323
      %s325 = smul.addr %s324, 4
      %s326 = scalar_lea.vmem %s0, %s325
      %p327 = scmp.lt.s32.totalorder %s24, 0
      %s328 = scalar_select %p327, %s24, 0
      %s329 = smul.addr %s328, 2
      %s330 = scalar_lea.vmem %s5, %s329
      %p331 = scmp.lt.s32.totalorder %s23, 1
      %s332 = scalar_select %p331, %s23, 1
      %p333 = scmp.lt.s32.totalorder %s24, 0
      %s334 = scalar_select %p333, %s24, 0
      %s335 = smul.addr %s332, 2
      %s336 = sadd.s32 %s334, %s335
      %s337 = smul.addr %s336, 4
      %s338 = scalar_lea.vmem %s6, %s337
      %p339 = scmp.lt.s32.totalorder %s23, 1
      %s340 = scalar_select %p339, %s23, 1
      %p341 = scmp.lt.s32.totalorder %s24, 0
      %s342 = scalar_select %p341, %s24, 0
      %s343 = sadd.s32 %s342, %s340
      %s344 = smul.addr %s343, 8
      %s345 = scalar_lea.vmem %s7, %s344
      %v347 = vld [vmem:[%s1] sm:$0xf]
      %v348 = vld [vmem:[%s1 + $0x4] sm:$0xf]
      %v349 = vld [vmem:[%s326] sm:$0xf]
      %v350 = vld [vmem:[%s326 + $0x4] sm:$0xf]
      %v351 = vld [vmem:[%s2] sm:$0xff]
      %v352 = vld [vmem:[%s2 + $0x8] sm:$0xff]
      %354 = vset.pattern.permute.xlu0 0
      %355 = vperm.xlu0 %354, %v351
      %v356 = vpop.permute.xlu0 %355
      %359 = vset.pattern.permute.xlu0 0
      %360 = vperm.xlu0 %359, %v352
      %v361 = vpop.permute.xlu0 %360
      %v365 = vunpack.c.l.b16 %v347
      %v366 = vunpack.c.l.b16 %v348
      %v367 = vpack.c.b16 %v366, %v365
      %v370 = vunpack.c.l.b16 %v349
      %v371 = vunpack.c.l.b16 %v350
      %v372 = vpack.c.b16 %v371, %v370
      %vm374 = vcmask 130048
      %v376 = vsel %vm374, %v367, 0
      %378 = vmatpush.bf16.msra.mxu0 0
      %379 = vmatpush.bf16.msra.mxu0 0
      %380 = vmatpush.bf16.msra.mxu0 0
      %381 = vmatpush.bf16.msra.mxu0 0
      %382 = vmatpush.bf16.msra.mxu0 0
      %383 = vmatpush.bf16.msra.mxu0 0
      %384 = vmatpush.bf16.msra.mxu0 0
      %385 = vmatpush.bf16.msra.mxu0 %v372
      %386 = vmatmul.bf16.gmra.mxu0 %v376
      %v387 = vpop.f32.mrf.mxu0
      %v388 = vadd.f32 %v356, %v387
      %v389 = vpop.f32.mrf.mxu0
      %v390 = vadd.f32 %v361, %v389
      %391 = vdwg.mxu0
      %v392 = vmax.f32 %v388, 0.0
      %v393 = vmax.f32 %v390, 0.0
      %v394 = vpack.c.bf16 %v392, %v392
      %v395 = vpack.c.bf16 %v393, %v393
      %vm396 = vcmask 125952
      %397 = vst.msk [vmem:[%s338] sm:$0xf] %vm396, %v394
      %398 = vst.msk [vmem:[%s338 + $0x4] sm:$0xf] %vm396, %v395
      %v399 = vld [vmem:[%s3] sm:$0xf]
      %v400 = vld [vmem:[%s3 + $0x4] sm:$0x1]
      %v401 = vld [vmem:[%s4] sm:$0xff]
      %v402 = vld [vmem:[%s4 + $0x8] sm:$0x1]
      %404 = vset.pattern.permute.xlu0 0
      %405 = vperm.xlu0 %404, %v401
      %v406 = vpop.permute.xlu0 %405
      %409 = vset.pattern.permute.xlu0 0
      %410 = vperm.xlu0 %409, %v402
      %v411 = vpop.permute.xlu0 %410
      %v415 = vunpack.c.l.b16 %v399
      %v416 = vunpack.c.l.b16 %v400
      %v417 = vpack.c.b16 %v416, %v415
      %v420 = vunpack.c.l.b16 %v394
      %v421 = vunpack.c.l.b16 %v395
      %v422 = vpack.c.b16 %v421, %v420
      %v425 = vsel %vm374, %v417, 0
      %427 = vmatpush.bf16.msra.mxu0 0
      %428 = vmatpush.bf16.msra.mxu0 0
      %429 = vmatpush.bf16.msra.mxu0 0
      %430 = vmatpush.bf16.msra.mxu0 0
      %431 = vmatpush.bf16.msra.mxu0 0
      %432 = vmatpush.bf16.msra.mxu0 0
      %433 = vmatpush.bf16.msra.mxu0 0
      %434 = vmatpush.bf16.msra.mxu0 %v422
      %435 = vmatmul.bf16.gmra.mxu0 %v425
      %v436 = vpop.f32.mrf.mxu0
      %v437 = vadd.f32 %v406, %v436
      %v438 = vpop.f32.mrf.mxu0
      %v439 = vadd.f32 %v411, %v438
      %440 = vdwg.mxu0
      %v441 = vxor.u32 %v437, 2147483648
      %v442 = vmul.f32 %v441, 1.442695
      %v443 = vpow.pop %v442
      %v444 = vadd.f32 %v443, 1.0
      %v445 = vrcp.pop %v444
      %v446 = vmul.f32 %v444, %v445
      %v447 = vsub.f32 1.0, %v446
      %v448 = vmul.f32 %v445, %v447
      %v449 = vadd.f32 %v445, %v448
      %vm450 = vweird.f32 %v444
      %vm451 = vweird.f32 %v445
      %vm452 = vmor %vm450, %vm451
      %v453 = vsel %vm452, %v445, %v449
      %v454 = vand.u32 2147483647, %v444
      %vm455 = vcmp.eq.f32.partialorder %v454, 8.507059e+37
      %v456 = vand.u32 %v444, 2147483648
      %v457 = vor.u32 1.1754944e-38, %v456
      %v458 = vsel %vm455, %v457, %v453
      %v459 = vmul.f32 1.0, %v458
      %v460 = vmul.f32 %v437, 1.442695
      %v461 = vpow.pop %v460
      %v462 = vmul.f32 %v439, 1.442695
      %v463 = vpow.pop %v462
      %v464 = vsel %vm396, %v459, -inf
      %v465 = vrot.slane %v464, 4
      %v466 = vmax.f32 %v464, %v465
      %v467 = vrot.slane %v466, 2
      %v468 = vmax.f32 %v466, %v467
      %v469 = vrot.slane %v468, 1
      %v470 = vmax.f32 %v468, %v469
      %v471 = vlaneseq
      %v472 = vshrl.u32 %v471, 7
      %vm473 = vcmp.eq.f32.partialorder %v459, %v470
      %v474 = vsel %vm473, %v472, 4
      %v475 = vsel %vm396, %v474, 2147483647
      %v476 = vrot.slane %v475, 4
      %vm477 = vcmp.lt.s32.totalorder %v475, %v476
      %v478 = vsel %vm477, %v475, %v476
      %v479 = vrot.slane %v478, 2
      %vm480 = vcmp.lt.s32.totalorder %v478, %v479
      %v481 = vsel %vm480, %v478, %v479
      %v482 = vrot.slane %v481, 1
      %vm483 = vcmp.lt.s32.totalorder %v481, %v482
      %v484 = vsel %vm483, %v481, %v482
      %v485 = vadd.s32 %v484, 1
      %v486 = vcvt.s32.f32 %v485
      %v487 = vmul.f32 %v470, %v459
      %v488 = vrsqrt.pop %v487
      %v489 = vmul.f32 %v488, %v487
      %v490 = vmul.f32 %v489, %v488
      %v491 = vmul.f32 0.5, %v490
      %v492 = vsub.f32 1.5, %v491
      %v493 = vmul.f32 %v488, %v492
      %v494 = vmul.f32 %v487, %v493
      %vm495 = vcmp.eq.f32.partialorder %v487, inf
      %v496 = vsel %vm495, %v487, %v494
      %vm497 = vcmp.eq.f32.partialorder %v487, 0.0
      %v498 = vand.u32 %v487, 2147483648
      %v499 = vsel %vm497, %v498, %v496
      %s500 = smul.u32 %s24, 16
      %v501 = vlaneseq
      %v502 = vand.u32 %v501, 127
      %v503 = vstv %s500
      %v504 = vadd.s32 %v503, %v502
      %vm505 = vcmp.lt.s32.totalorder %v504, 16
      %v506 = vsel %vm505, %v499, -1.0
      %v507 = vld [vmem:[%s330] sm:$0x1]
      %v508 = vld [vmem:[%s330 + $0x1] sm:$0x1]
      %v510 = vrot.slane %v461, 5
      %v512 = vsub.f32 %v507, %v510
      %v513 = vmax.f32 %v512, 0.0
      %v514 = vmin.f32 %v513, 31.0
      %v515 = vrot.slane %v461, 6
      %v517 = vsub.f32 %v508, %v515
      %v518 = vmax.f32 %v517, 0.0
      %v519 = vmin.f32 %v518, 31.0
      %v520 = vrot.slane %v461, 7
      %v522 = vadd.f32 %v507, %v520
      %v523 = vmax.f32 %v522, 0.0
      %v524 = vmin.f32 %v523, 31.0
      %v525 = vadd.f32 %v508, %v463
      %v526 = vmax.f32 %v525, 0.0
      %v527 = vmin.f32 %v526, 31.0
      %v529 = vrot.slane %v506, 4
      %v532 = vrot.slane %v514, 6
      %v535 = vrot.slane %v519, 5
      %v538 = vrot.slane %v524, 4
      %v541 = vrot.slane %v527, 3
      %vm543 = vcmask 1040384
      %v544 = vsel %vm543, %v529, %v486
      %vm545 = vcmask 1041408
      %v546 = vsel %vm545, %v544, %v532
      %vm547 = vcmask 1042432
      %v548 = vsel %vm547, %v546, %v535
      %vm549 = vcmask 1043456
      %v550 = vsel %vm549, %v548, %v538
      %vm551 = vcmask 1044480
      %v552 = vsel %vm551, %v550, %v541
      %vm553 = vcmask 1045504
      %v554 = vsel %vm553, %v552, 0.0
      %555 = vst.msk [vmem:[%s345] sm:$0xff] %vm374, %v554
      %p556 = scmp.lt.s32.totalorder %s23, 1
      %s557 = scalar_select %p556, %s23, 1
      %p558 = scmp.lt.s32.totalorder %s24, 0
      %s559 = scalar_select %p558, %s24, 0
      %s560 = smul.addr %s557, 2
      %s561 = sadd.s32 %s559, %s560
      %s562 = smul.addr %s561, 4
      %s563 = scalar_lea.vmem %s6, %s562
      %p564 = scmp.lt.s32.totalorder %s23, 1
      %s565 = scalar_select %p564, %s23, 1
      %p566 = scmp.lt.s32.totalorder %s24, 0
      %s567 = scalar_select %p566, %s24, 0
      %s568 = sadd.s32 %s567, %s565
      %s569 = smul.addr %s568, 8
      %s570 = scalar_lea.vmem %s7, %s569
      // Predicated region
      $region45: #{fcos_detector_inference.6} parent=43 // pred_check
        %p571 = pneg %p189
      $region46: #{fcos_detector_inference.6} parent=43 // pred_check_branch
        %573 = sbr.rel (%p571) target = $region48
      $region47: #{fcos_detector_inference.6} parent=43 // pred_region
        _
      $region48: #{fcos_detector_inference.6} parent=43 // pred_fallthru
        _
      // Predicated region
      $region49: #{fcos_detector_inference.6} parent=43 // pred_check
        %p574 = pneg %p217
      $region50: #{fcos_detector_inference.6} parent=43 // pred_check_branch
        %576 = sbr.rel (%p574) target = $region52
      $region51: #{fcos_detector_inference.6} parent=43 // pred_region
        _
      $region52: #{fcos_detector_inference.6} parent=43 // pred_fallthru
        _
    $region44: #{fcos_detector_inference.6} parent=5 // pred_fallthru
      _
    %p577 = scmp.le.s32.totalorder 2, %s14
    // Predicated region
    $region53: #{fcos_detector_inference.6} parent=5 // pred_check
      %p578 = pneg %p577
    $region54: #{fcos_detector_inference.6} parent=5 // pred_check_branch
      %580 = sbr.rel (%p578) target = $region56
    $region55: #{fcos_detector_inference.6} parent=5 // pred_region
      %s581 = ssub.s32 %s14, 2
      // Predicated region
      $region57: #{fcos_detector_inference.6} parent=55 // pred_check
        %p582 = pneg %p195
      $region58: #{fcos_detector_inference.6} parent=55 // pred_check_branch
        %584 = sbr.rel (%p582) target = $region60
      $region59: #{fcos_detector_inference.6} parent=55 // pred_region
        %p585 = scmp.lt.s32.totalorder %s25, 1
        %s586 = scalar_select %p585, %s25, 1
        %p587 = scmp.lt.s32.totalorder %s26, 0
        %s588 = scalar_select %p587, %s26, 0
        %s589 = smul.addr %s586, 2
        %s590 = sadd.s32 %s588, %s589
        %s591 = smul.addr %s590, 4
        %s592 = scalar_lea.vmem %s6, %s591
      $region60: #{fcos_detector_inference.6} parent=55 // pred_fallthru
        _
      // Predicated region
      $region61: #{fcos_detector_inference.6} parent=55 // pred_check
        %p593 = pneg %p223
      $region62: #{fcos_detector_inference.6} parent=55 // pred_check_branch
        %595 = sbr.rel (%p593) target = $region64
      $region63: #{fcos_detector_inference.6} parent=55 // pred_region
        %p596 = scmp.lt.s32.totalorder %s25, 1
        %s597 = scalar_select %p596, %s25, 1
        %p598 = scmp.lt.s32.totalorder %s26, 0
        %s599 = scalar_select %p598, %s26, 0
        %s600 = sadd.s32 %s599, %s597
        %s601 = smul.addr %s600, 8
        %s602 = scalar_lea.vmem %s7, %s601
      $region64: #{fcos_detector_inference.6} parent=55 // pred_fallthru
        _
    $region56: #{fcos_detector_inference.6} parent=5 // pred_fallthru
      _
  $region6: #{fcos_detector_inference.6} parent=0 // loop_footer
    %s18 = sadd.s32 1, %s14
  $region7: #{fcos_detector_inference.6} parent=0 // loop_footer_branch
    %13 = sbr.rel target = $region3
  $region8: #{fcos_detector_inference.6} parent=0 // loop_exit
    _

// kernel: fcos_detector_inference.7
$region0: #{fcos_detector_inference.7}
  #allocation0 [shape = 'u32[]', space=smem, size = 0x4, offset = 0x4, fixed_abs, tag = 'smem constant byte address 0x4 - core index']
  #allocation1 [shape = 'u32[72,128]{1,0:T(1,128)}', space=vmem, size = 0x9000, scoped, tag = 'internal scratch']
  %s0 = inlined_call_operand.vmem [shape: bf16[2,16,4], index: 0, kind: input, shape index: {}]
  %s1 = inlined_call_operand.vmem [shape: bf16[16,16], index: 1, kind: input, shape index: {}]
  %s2 = inlined_call_operand.vmem [shape: f32[16,1], index: 2, kind: input, shape index: {}]
  %s3 = inlined_call_operand.vmem [shape: bf16[9,16], index: 3, kind: input, shape index: {}]
  %s4 = inlined_call_operand.vmem [shape: f32[9,1], index: 4, kind: input, shape index: {}]
  %s5 = inlined_call_operand.vmem [shape: f32[2,4], index: 5, kind: input, shape index: {}]
  %s6 = inlined_call_operand.hbm [shape: bf16[2,16,4], index: 6, kind: output, shape index: {0}]
  %s7 = inlined_call_operand.vmem [shape: f32[2,8,4], index: 7, kind: output, shape index: {1}]
  %8 = xla_tuple %s6, %s7
  %s9 = sld [smem:[#allocation0]]
  $region65: #{fcos_detector_inference.7} parent=0
    _
  %s11 = ssub.s32 1, %s9
  %s12 = scalar_select 0, %s11, %s9
  $region1: #{fcos_detector_inference.7} parent=0
    #allocation2 [shape = 'u8[8192]{0}', space=vmem, size = 0x2000, scoped, tag = 'output window, operand 0']
    #allocation3 [shape = 's32[2]{0}', space=sflag, size = 0x8, scoped, tag = 'scoped memory for fcos_detector_inference.7']
    %13 = vsyncpa [#allocation3], 0
    %s14 = scalar_lea.sflag [#allocation3], 1
    %15 = vsyncpa %s14, 0
    loop: start=0, step=1, limit=4
    $region2: #{fcos_detector_inference.7} parent=1 // loop_pre_header
      _
    $region3: #{fcos_detector_inference.7} parent=1 // loop_header
      %s17 = sphi 0, %s21
      %p18 = scmp.ge.s32.totalorder %s17, 4
      %s24 = sphi 0, %s36
      %s25 = sphi 0, %s32
      %s26 = sphi 0, %s24
      %s27 = sphi 0, %s25
      %s28 = sphi 0, %s26
      %s29 = sphi 0, %s27
      %s41 = sphi 0, %s43
      %s44 = sphi 0, %s41
      %s45 = sphi 0, %s44
      %s61 = sphi 0, %s45
      %s65 = sphi 0, %s65
      %s67 = sphi 0, %s65
      %s68 = sphi 0, %s67
      %s82 = sphi 0, %s68
      %s86 = sphi 0, %s86
      %s88 = sphi 0, %s86
      %s89 = sphi 0, %s88
      %s103 = sphi 0, %s89
      %s107 = sphi 0, %s107
      %s109 = sphi 0, %s107
      %s110 = sphi 0, %s109
      %s124 = sphi 0, %s110
      %s128 = sphi 0, %s128
      %s130 = sphi 0, %s128
      %s131 = sphi 0, %s130
      %s145 = sphi 0, %s131
      %s151 = sphi 0, %s153
      %s154 = sphi 0, %s151
      %s155 = sphi 0, %s154
      %s171 = sphi 0, %s155
      %s179 = sphi 0, %s181
      %s182 = sphi 0, %s179
      %s183 = sphi 0, %s182
      %s199 = sphi 0, %s183
      %s207 = sphi 0, %s209
      %s210 = sphi 0, %s207
      %s211 = sphi 0, %s210
      %s227 = sphi 0, %s211
    $region4: #{fcos_detector_inference.7} parent=1 // loop_header_branch
      %20 = sbr.rel (%p18) target = $region8
    $region5: #{fcos_detector_inference.7} parent=1 // loop_body
      %s22 = ssub.s32 %s17, 1
      %s23 = ssub.s32 %s17, 2
      %s30 = sadd.s32 1, %s25
      %p31 = scmp.ge.s32.totalorder %s30, 1
      %s32 = scalar_select %p31, 0, %s30
      %s33 = sadd.s32 1, %s24
      %s34 = scalar_select %p31, %s33, %s24
      %p35 = scmp.ge.s32.totalorder %s34, 2
      %s36 = scalar_select %p35, 0, %s34
      %s37 = ssub.s32 %s24, %s36
      %s38 = ssub.s32 %s25, %s32
      %s39 = sor.u32 %s37, %s38
      %p40 = scmp.eq.s32.totalorder %s39, 0
      %s42 = sadd.s32 %s41, 1
      %s43 = scalar_select %p40, %s41, %s42
      %p46 = pneg %p40
      %p47 = scmp.eq.s32.totalorder %s17, 1
      %p48 = por %p46, %p47
      %p49 = scmp.ne.s32.totalorder %s41, %s44
      %p50 = scmp.eq.s32.totalorder %s17, 0
      %p51 = por %p49, %p50
      %p52 = scmp.ne.s32.totalorder %s41, %s44
      %p53 = scmp.eq.s32.totalorder %s22, 1
      %p54 = por %p52, %p53
      %p55 = scmp.ne.s32.totalorder %s44, %s45
      %p56 = scmp.eq.s32.totalorder %s22, 0
      %p57 = por %p55, %p56
      %p58 = scmp.ne.s32.totalorder %s44, %s45
      %p59 = scmp.eq.s32.totalorder %s23, 1
      %p60 = por %p58, %p59
      %p62 = scmp.ne.s32.totalorder %s45, %s61
      %p63 = scmp.eq.s32.totalorder %s23, 0
      %p64 = por %p62, %p63
      %s66 = sadd.s32 %s65, 1
      %p69 = scmp.eq.s32.totalorder %s17, 1
      %p70 = scmp.ne.s32.totalorder %s65, %s67
      %p71 = scmp.eq.s32.totalorder %s17, 0
      %p72 = por %p70, %p71
      %p73 = scmp.ne.s32.totalorder %s65, %s67
      %p74 = scmp.eq.s32.totalorder %s22, 1
      %p75 = por %p73, %p74
      %p76 = scmp.ne.s32.totalorder %s67, %s68
      %p77 = scmp.eq.s32.totalorder %s22, 0
      %p78 = por %p76, %p77
      %p79 = scmp.ne.s32.totalorder %s67, %s68
      %p80 = scmp.eq.s32.totalorder %s23, 1
      %p81 = por %p79, %p80
      %p83 = scmp.ne.s32.totalorder %s68, %s82
      %p84 = scmp.eq.s32.totalorder %s23, 0
      %p85 = por %p83, %p84
      %s87 = sadd.s32 %s86, 1
      %p90 = scmp.eq.s32.totalorder %s17, 1
      %p91 = scmp.ne.s32.totalorder %s86, %s88
      %p92 = scmp.eq.s32.totalorder %s17, 0
      %p93 = por %p91, %p92
      %p94 = scmp.ne.s32.totalorder %s86, %s88
      %p95 = scmp.eq.s32.totalorder %s22, 1
      %p96 = por %p94, %p95
      %p97 = scmp.ne.s32.totalorder %s88, %s89
      %p98 = scmp.eq.s32.totalorder %s22, 0
      %p99 = por %p97, %p98
      %p100 = scmp.ne.s32.totalorder %s88, %s89
      %p101 = scmp.eq.s32.totalorder %s23, 1
      %p102 = por %p100, %p101
      %p104 = scmp.ne.s32.totalorder %s89, %s103
      %p105 = scmp.eq.s32.totalorder %s23, 0
      %p106 = por %p104, %p105
      %s108 = sadd.s32 %s107, 1
      %p111 = scmp.eq.s32.totalorder %s17, 1
      %p112 = scmp.ne.s32.totalorder %s107, %s109
      %p113 = scmp.eq.s32.totalorder %s17, 0
      %p114 = por %p112, %p113
      %p115 = scmp.ne.s32.totalorder %s107, %s109
      %p116 = scmp.eq.s32.totalorder %s22, 1
      %p117 = por %p115, %p116
      %p118 = scmp.ne.s32.totalorder %s109, %s110
      %p119 = scmp.eq.s32.totalorder %s22, 0
      %p120 = por %p118, %p119
      %p121 = scmp.ne.s32.totalorder %s109, %s110
      %p122 = scmp.eq.s32.totalorder %s23, 1
      %p123 = por %p121, %p122
      %p125 = scmp.ne.s32.totalorder %s110, %s124
      %p126 = scmp.eq.s32.totalorder %s23, 0
      %p127 = por %p125, %p126
      %s129 = sadd.s32 %s128, 1
      %p132 = scmp.eq.s32.totalorder %s17, 1
      %p133 = scmp.ne.s32.totalorder %s128, %s130
      %p134 = scmp.eq.s32.totalorder %s17, 0
      %p135 = por %p133, %p134
      %p136 = scmp.ne.s32.totalorder %s128, %s130
      %p137 = scmp.eq.s32.totalorder %s22, 1
      %p138 = por %p136, %p137
      %p139 = scmp.ne.s32.totalorder %s130, %s131
      %p140 = scmp.eq.s32.totalorder %s22, 0
      %p141 = por %p139, %p140
      %p142 = scmp.ne.s32.totalorder %s130, %s131
      %p143 = scmp.eq.s32.totalorder %s23, 1
      %p144 = por %p142, %p143
      %p146 = scmp.ne.s32.totalorder %s131, %s145
      %p147 = scmp.eq.s32.totalorder %s23, 0
      %p148 = por %p146, %p147
      %s149 = ssub.s32 %s25, %s32
      %p150 = scmp.eq.s32.totalorder %s149, 0
      %s152 = sadd.s32 %s151, 1
      %s153 = scalar_select %p150, %s151, %s152
      %p156 = pneg %p150
      %p157 = scmp.eq.s32.totalorder %s17, 1
      %p158 = por %p156, %p157
      %p159 = scmp.ne.s32.totalorder %s151, %s154
      %p160 = scmp.eq.s32.totalorder %s17, 0
      %p161 = por %p159, %p160
      %p162 = scmp.ne.s32.totalorder %s151, %s154
      %p163 = scmp.eq.s32.totalorder %s22, 1
      %p164 = por %p162, %p163
      %p165 = scmp.ne.s32.totalorder %s154, %s155
      %p166 = scmp.eq.s32.totalorder %s22, 0
      %p167 = por %p165, %p166
      %p168 = scmp.ne.s32.totalorder %s154, %s155
      %p169 = scmp.eq.s32.totalorder %s23, 1
      %p170 = por %p168, %p169
      %p172 = scmp.ne.s32.totalorder %s155, %s171
      %p173 = scmp.eq.s32.totalorder %s23, 0
      %p174 = por %p172, %p173
      %s175 = ssub.s32 %s24, %s36
      %s176 = ssub.s32 %s25, %s32
      %s177 = sor.u32 %s175, %s176
      %p178 = scmp.eq.s32.totalorder %s177, 0
      %s180 = sadd.s32 %s179, 1
      %s181 = scalar_select %p178, %s179, %s180
      %p184 = pneg %p178
      %p185 = scmp.eq.s32.totalorder %s17, 1
      %p186 = por %p184, %p185
      %p187 = scmp.ne.s32.totalorder %s179, %s182
      %p188 = scmp.eq.s32.totalorder %s17, 0
      %p189 = por %p187, %p188
      %p190 = scmp.ne.s32.totalorder %s179, %s182
      %p191 = scmp.eq.s32.totalorder %s22, 1
      %p192 = por %p190, %p191
      %p193 = scmp.ne.s32.totalorder %s182, %s183
      %p194 = scmp.eq.s32.totalorder %s22, 0
      %p195 = por %p193, %p194
      %p196 = scmp.ne.s32.totalorder %s182, %s183
      %p197 = scmp.eq.s32.totalorder %s23, 1
      %p198 = por %p196, %p197
      %p200 = scmp.ne.s32.totalorder %s183, %s199
      %p201 = scmp.eq.s32.totalorder %s23, 0
      %p202 = por %p200, %p201
      %s203 = ssub.s32 %s24, %s36
      %s204 = ssub.s32 %s25, %s32
      %s205 = sor.u32 %s203, %s204
      %p206 = scmp.eq.s32.totalorder %s205, 0
      %s208 = sadd.s32 %s207, 1
      %s209 = scalar_select %p206, %s207, %s208
      %p212 = pneg %p206
      %p213 = scmp.eq.s32.totalorder %s17, 1
      %p214 = por %p212, %p213
      %p215 = scmp.ne.s32.totalorder %s207, %s210
      %p216 = scmp.eq.s32.totalorder %s17, 0
      %p217 = por %p215, %p216
      %p218 = scmp.ne.s32.totalorder %s207, %s210
      %p219 = scmp.eq.s32.totalorder %s22, 1
      %p220 = por %p218, %p219
      %p221 = scmp.ne.s32.totalorder %s210, %s211
      %p222 = scmp.eq.s32.totalorder %s22, 0
      %p223 = por %p221, %p222
      %p224 = scmp.ne.s32.totalorder %s210, %s211
      %p225 = scmp.eq.s32.totalorder %s23, 1
      %p226 = por %p224, %p225
      %p228 = scmp.ne.s32.totalorder %s211, %s227
      %p229 = scmp.eq.s32.totalorder %s23, 0
      %p230 = por %p228, %p229
      %p231 = scmp.le.s32.totalorder 1, %s17
      %p232 = scmp.lt.s32.totalorder %s17, 3
      %p233 = pnand %p231, %p232
      %p234 = pneg %p233
      // Predicated region
      $region9: #{fcos_detector_inference.7} parent=5 // pred_check
        _
      $region10: #{fcos_detector_inference.7} parent=5 // pred_check_branch
        %236 = sbr.rel (%p233) target = $region12
      $region11: #{fcos_detector_inference.7} parent=5 // pred_region
        %s237 = ssub.s32 %s17, 1
        // Predicated region
        $region13: #{fcos_detector_inference.7} parent=11 // pred_check
          %p238 = pneg %p78
        $region14: #{fcos_detector_inference.7} parent=11 // pred_check_branch
          %240 = sbr.rel (%p238) target = $region16
        $region15: #{fcos_detector_inference.7} parent=11 // pred_region
          _
        $region16: #{fcos_detector_inference.7} parent=11 // pred_fallthru
          _
        // Predicated region
        $region17: #{fcos_detector_inference.7} parent=11 // pred_check
          %p241 = pneg %p99
        $region18: #{fcos_detector_inference.7} parent=11 // pred_check_branch
          %243 = sbr.rel (%p241) target = $region20
        $region19: #{fcos_detector_inference.7} parent=11 // pred_region
          _
        $region20: #{fcos_detector_inference.7} parent=11 // pred_fallthru
          _
        // Predicated region
        $region21: #{fcos_detector_inference.7} parent=11 // pred_check
          %p244 = pneg %p120
        $region22: #{fcos_detector_inference.7} parent=11 // pred_check_branch
          %246 = sbr.rel (%p244) target = $region24
        $region23: #{fcos_detector_inference.7} parent=11 // pred_region
          _
        $region24: #{fcos_detector_inference.7} parent=11 // pred_fallthru
          _
        // Predicated region
        $region25: #{fcos_detector_inference.7} parent=11 // pred_check
          %p247 = pneg %p141
        $region26: #{fcos_detector_inference.7} parent=11 // pred_check_branch
          %249 = sbr.rel (%p247) target = $region28
        $region27: #{fcos_detector_inference.7} parent=11 // pred_region
          _
        $region28: #{fcos_detector_inference.7} parent=11 // pred_fallthru
          _
        // Predicated region
        $region29: #{fcos_detector_inference.7} parent=11 // pred_check
          %p250 = pneg %p167
        $region30: #{fcos_detector_inference.7} parent=11 // pred_check_branch
          %252 = sbr.rel (%p250) target = $region32
        $region31: #{fcos_detector_inference.7} parent=11 // pred_region
          %p253 = scmp.lt.s32.totalorder %s27, 0
          %s254 = scalar_select %p253, %s27, 0
          %s255 = smul.addr %s254, 2
          %s256 = scalar_lea.vmem %s5, %s255
        $region32: #{fcos_detector_inference.7} parent=11 // pred_fallthru
          _
      $region12: #{fcos_detector_inference.7} parent=5 // pred_fallthru
        _
      %p257 = scmp.lt.s32.totalorder %s17, 2
      // Predicated region
      $region33: #{fcos_detector_inference.7} parent=5 // pred_check
        %p258 = pneg %p257
      $region34: #{fcos_detector_inference.7} parent=5 // pred_check_branch
        %260 = sbr.rel (%p258) target = $region36
      $region35: #{fcos_detector_inference.7} parent=5 // pred_region
        // Predicated region
        $region37: #{fcos_detector_inference.7} parent=35 // pred_check
          %p261 = pneg %p51
        $region38: #{fcos_detector_inference.7} parent=35 // pred_check_branch
          %263 = sbr.rel (%p261) target = $region40
        $region39: #{fcos_detector_inference.7} parent=35 // pred_region
          %p264 = scmp.lt.s32.totalorder %s24, 1
          %s265 = scalar_select %p264, %s24, 1
          %p266 = scmp.lt.s32.totalorder %s25, 0
          %s267 = scalar_select %p266, %s25, 0
          %s268 = smul.addr %s265, 2
          %s269 = sadd.s32 %s267, %s268
          %s270 = smul.addr %s269, 4
          %s271 = scalar_lea.vmem %s0, %s270
        $region40: #{fcos_detector_inference.7} parent=35 // pred_fallthru
          _
      $region36: #{fcos_detector_inference.7} parent=5 // pred_fallthru
        _
      %p272 = scmp.le.s32.totalorder 1, %s17
      %p273 = scmp.lt.s32.totalorder %s17, 3
      %p274 = pnand %p272, %p273
      %p275 = pneg %p274
      // Predicated region
      $region41: #{fcos_detector_inference.7} parent=5 // pred_check
        _
      $region42: #{fcos_detector_inference.7} parent=5 // pred_check_branch
        %277 = sbr.rel (%p274) target = $region44
      $region43: #{fcos_detector_inference.7} parent=5 // pred_region
        %s278 = ssub.s32 %s17, 1
        %p279 = scmp.lt.s32.totalorder %s26, 1
        %s280 = scalar_select %p279, %s26, 1
        %p281 = scmp.lt.s32.totalorder %s27, 0
        %s282 = scalar_select %p281, %s27, 0
        %s283 = smul.addr %s280, 2
        %s284 = sadd.s32 %s282, %s283
        %s285 = smul.addr %s284, 4
        %s286 = scalar_lea.vmem %s0, %s285
        %p287 = pneg %p57
        %p288 = pneg %p54
        %p289 = pneg %p78
        %p290 = pneg %p75
        %p291 = pneg %p99
        %p292 = pneg %p96
        %p293 = pneg %p120
        %p294 = pneg %p117
        %p295 = pneg %p141
        %p296 = pneg %p138
        %p297 = scmp.lt.s32.totalorder %s27, 0
        %s298 = scalar_select %p297, %s27, 0
        %s299 = smul.addr %s298, 2
        %s300 = scalar_lea.vmem %s5, %s299
        %p301 = pneg %p167
        %p302 = pneg %p164
        %p303 = pneg %p195
        %p304 = pneg %p192
        %s305 = sand.u32 %s182, 1
        %s306 = scalar_lea.sflag [#allocation3], %s305
        %s307 = sand.u32 %s182, 1
        %s308 = smul.addr %s307, 8
        %s309 = scalar_lea.vmem [#allocation2], %s308
        %p310 = pneg %p223
        %p311 = pneg %p220
        %p312 = scmp.lt.s32.totalorder %s26, 1
        %s313 = scalar_select %p312, %s26, 1
        %p314 = scmp.lt.s32.totalorder %s27, 0
        %s315 = scalar_select %p314, %s27, 0
        %s316 = sadd.s32 %s315, %s313
        %s317 = smul.addr %s316, 8
        %s318 = scalar_lea.vmem %s7, %s317
        %p319 = scmp.lt.s32.totalorder %s26, 1
        %s320 = scalar_select %p319, %s26, 1
        %p321 = scmp.lt.s32.totalorder %s27, 0
        %s322 = scalar_select %p321, %s27, 0
        %s323 = smul.addr %s320, 2
        %s324 = sadd.s32 %s322, %s323
        %s325 = smul.addr %s324, 4
        %s326 = scalar_lea.vmem %s0, %s325
        %p327 = scmp.lt.s32.totalorder %s27, 0
        %s328 = scalar_select %p327, %s27, 0
        %s329 = smul.addr %s328, 2
        %s330 = scalar_lea.vmem %s5, %s329
        %p331 = scmp.lt.s32.totalorder %s26, 1
        %s332 = scalar_select %p331, %s26, 1
        %p333 = scmp.lt.s32.totalorder %s27, 0
        %s334 = scalar_select %p333, %s27, 0
        %s335 = sadd.s32 %s334, %s332
        %s336 = smul.addr %s335, 8
        %s337 = scalar_lea.vmem %s7, %s336
        %v339 = vld [vmem:[%s1] sm:$0xf]
        %v340 = vld [vmem:[%s1 + $0x4] sm:$0xf]
        %v341 = vld [vmem:[%s326] sm:$0xf]
        %v342 = vld [vmem:[%s326 + $0x4] sm:$0xf]
        %v343 = vld [vmem:[%s2] sm:$0xff]
        %v344 = vld [vmem:[%s2 + $0x8] sm:$0xff]
        %346 = vset.pattern.permute.xlu0 0
        %347 = vperm.xlu0 %346, %v343
        %v348 = vpop.permute.xlu0 %347
        %351 = vset.pattern.permute.xlu0 0
        %352 = vperm.xlu0 %351, %v344
        %v353 = vpop.permute.xlu0 %352
        %v357 = vunpack.c.l.b16 %v339
        %v358 = vunpack.c.l.b16 %v340
        %v359 = vpack.c.b16 %v358, %v357
        %v362 = vunpack.c.l.b16 %v341
        %v363 = vunpack.c.l.b16 %v342
        %v364 = vpack.c.b16 %v363, %v362
        %vm366 = vcmask 130048
        %v368 = vsel %vm366, %v359, 0
        %370 = vmatpush.bf16.msra.mxu0 0
        %371 = vmatpush.bf16.msra.mxu0 0
        %372 = vmatpush.bf16.msra.mxu0 0
        %373 = vmatpush.bf16.msra.mxu0 0
        %374 = vmatpush.bf16.msra.mxu0 0
        %375 = vmatpush.bf16.msra.mxu0 0
        %376 = vmatpush.bf16.msra.mxu0 0
        %377 = vmatpush.bf16.msra.mxu0 %v364
        %378 = vmatmul.bf16.gmra.mxu0 %v368
        %v379 = vpop.f32.mrf.mxu0
        %v380 = vadd.f32 %v348, %v379
        %v381 = vpop.f32.mrf.mxu0
        %v382 = vadd.f32 %v353, %v381
        %383 = vdwg.mxu0
        %v384 = vmax.f32 %v380, 0.0
        %v385 = vmax.f32 %v382, 0.0
        %v386 = vpack.c.bf16 %v384, %v384
        %v387 = vpack.c.bf16 %v385, %v385
        %vm388 = vcmask 27648
        %389 = vst.msk [vmem:[%s309] sm:$0xf] %vm388, %v386
        %390 = vst.msk [vmem:[%s309 + $0x4] sm:$0xf] %vm388, %v387
        %v391 = vld [vmem:[%s3] sm:$0xf]
        %v392 = vld [vmem:[%s3 + $0x4] sm:$0x1]
        %v393 = vld [vmem:[%s4] sm:$0xff]
        %v394 = vld [vmem:[%s4 + $0x8] sm:$0x1]
        %396 = vset.pattern.permute.xlu0 0
        %397 = vperm.xlu0 %396, %v393
        %v398 = vpop.permute.xlu0 %397
        %401 = vset.pattern.permute.xlu0 0
        %402 = vperm.xlu0 %401, %v394
        %v403 = vpop.permute.xlu0 %402
        %v407 = vunpack.c.l.b16 %v391
        %v408 = vunpack.c.l.b16 %v392
        %v409 = vpack.c.b16 %v408, %v407
        %v412 = vunpack.c.l.b16 %v386
        %v413 = vunpack.c.l.b16 %v387
        %v414 = vpack.c.b16 %v413, %v412
        %v417 = vsel %vm366, %v409, 0
        %419 = vmatpush.bf16.msra.mxu0 0
        %420 = vmatpush.bf16.msra.mxu0 0
        %421 = vmatpush.bf16.msra.mxu0 0
        %422 = vmatpush.bf16.msra.mxu0 0
        %423 = vmatpush.bf16.msra.mxu0 0
        %424 = vmatpush.bf16.msra.mxu0 0
        %425 = vmatpush.bf16.msra.mxu0 0
        %426 = vmatpush.bf16.msra.mxu0 %v414
        %427 = vmatmul.bf16.gmra.mxu0 %v417
        %v428 = vpop.f32.mrf.mxu0
        %v429 = vadd.f32 %v398, %v428
        %v430 = vpop.f32.mrf.mxu0
        %v431 = vadd.f32 %v403, %v430
        %432 = vdwg.mxu0
        %v433 = vxor.u32 %v429, 2147483648
        %v434 = vmul.f32 %v433, 1.442695
        %v435 = vpow.pop %v434
        %v436 = vadd.f32 %v435, 1.0
        %v437 = vrcp.pop %v436
        %v438 = vmul.f32 %v436, %v437
        %v439 = vsub.f32 1.0, %v438
        %v440 = vmul.f32 %v437, %v439
        %v441 = vadd.f32 %v437, %v440
        %vm442 = vweird.f32 %v436
        %vm443 = vweird.f32 %v437
        %vm444 = vmor %vm442, %vm443
        %v445 = vsel %vm444, %v437, %v441
        %v446 = vand.u32 2147483647, %v436
        %vm447 = vcmp.eq.f32.partialorder %v446, 8.507059e+37
        %v448 = vand.u32 %v436, 2147483648
        %v449 = vor.u32 1.1754944e-38, %v448
        %v450 = vsel %vm447, %v449, %v445
        %v451 = vmul.f32 1.0, %v450
        %v452 = vmul.f32 %v429, 1.442695
        %v453 = vpow.pop %v452
        %v454 = vmul.f32 %v431, 1.442695
        %v455 = vpow.pop %v454
        %v456 = vsel %vm388, %v451, -inf
        %v457 = vrot.slane %v456, 4
        %v458 = vmax.f32 %v456, %v457
        %v459 = vrot.slane %v458, 2
        %v460 = vmax.f32 %v458, %v459
        %v461 = vrot.slane %v460, 1
        %v462 = vmax.f32 %v460, %v461
        %v463 = vlaneseq
        %v464 = vshrl.u32 %v463, 7
        %vm465 = vcmp.eq.f32.partialorder %v451, %v462
        %v466 = vsel %vm465, %v464, 4
        %v467 = vsel %vm388, %v466, 2147483647
        %v468 = vrot.slane %v467, 4
        %vm469 = vcmp.lt.s32.totalorder %v467, %v468
        %v470 = vsel %vm469, %v467, %v468
        %v471 = vrot.slane %v470, 2
        %vm472 = vcmp.lt.s32.totalorder %v470, %v471
        %v473 = vsel %vm472, %v470, %v471
        %v474 = vrot.slane %v473, 1
        %vm475 = vcmp.lt.s32.totalorder %v473, %v474
        %v476 = vsel %vm475, %v473, %v474
        %v477 = vadd.s32 %v476, 1
        %v478 = vcvt.s32.f32 %v477
        %v479 = vmul.f32 %v462, %v451
        %v480 = vrsqrt.pop %v479
        %v481 = vmul.f32 %v480, %v479
        %v482 = vmul.f32 %v481, %v480
        %v483 = vmul.f32 0.5, %v482
        %v484 = vsub.f32 1.5, %v483
        %v485 = vmul.f32 %v480, %v484
        %v486 = vmul.f32 %v479, %v485
        %vm487 = vcmp.eq.f32.partialorder %v479, inf
        %v488 = vsel %vm487, %v479, %v486
        %vm489 = vcmp.eq.f32.partialorder %v479, 0.0
        %v490 = vand.u32 %v479, 2147483648
        %v491 = vsel %vm489, %v490, %v488
        %s492 = smul.u32 %s27, 4
        %v493 = vlaneseq
        %v494 = vand.u32 %v493, 127
        %v495 = vstv %s492
        %v496 = vadd.s32 %v495, %v494
        %vm497 = vcmp.lt.s32.totalorder %v496, 4
        %v498 = vsel %vm497, %v491, -1.0
        %v499 = vld [vmem:[%s330] sm:$0x1]
        %v500 = vld [vmem:[%s330 + $0x1] sm:$0x1]
        %v502 = vrot.slane %v453, 5
        %v504 = vsub.f32 %v499, %v502
        %v505 = vmax.f32 %v504, 0.0
        %v506 = vmin.f32 %v505, 31.0
        %v507 = vrot.slane %v453, 6
        %v509 = vsub.f32 %v500, %v507
        %v510 = vmax.f32 %v509, 0.0
        %v511 = vmin.f32 %v510, 31.0
        %v512 = vrot.slane %v453, 7
        %v514 = vadd.f32 %v499, %v512
        %v515 = vmax.f32 %v514, 0.0
        %v516 = vmin.f32 %v515, 31.0
        %v517 = vadd.f32 %v500, %v455
        %v518 = vmax.f32 %v517, 0.0
        %v519 = vmin.f32 %v518, 31.0
        %v521 = vrot.slane %v498, 4
        %v524 = vrot.slane %v506, 6
        %v527 = vrot.slane %v511, 5
        %v530 = vrot.slane %v516, 4
        %v533 = vrot.slane %v519, 3
        %vm535 = vcmask 1040384
        %v536 = vsel %vm535, %v521, %v478
        %vm537 = vcmask 1041408
        %v538 = vsel %vm537, %v536, %v524
        %vm539 = vcmask 1042432
        %v540 = vsel %vm539, %v538, %v527
        %vm541 = vcmask 1043456
        %v542 = vsel %vm541, %v540, %v530
        %vm543 = vcmask 1044480
        %v544 = vsel %vm543, %v542, %v533
        %vm545 = vcmask 1045504
        %v546 = vsel %vm545, %v544, 0.0
        %vm547 = vcmask 31744
        %548 = vst.msk [vmem:[%s337] sm:$0xff] %vm547, %v546
        %s549 = sand.u32 %s182, 1
        %s550 = scalar_lea.sflag [#allocation3], %s549
        %s551 = sand.u32 %s182, 1
        %s552 = smul.addr %s551, 8
        %s553 = scalar_lea.vmem [#allocation2], %s552
        %p554 = scmp.lt.s32.totalorder %s26, 1
        %s555 = scalar_select %p554, %s26, 1
        %p556 = scmp.lt.s32.totalorder %s27, 0
        %s557 = scalar_select %p556, %s27, 0
        %s558 = sadd.s32 %s557, %s555
        %s559 = smul.addr %s558, 8
        %s560 = scalar_lea.vmem %s7, %s559
        // Predicated region
        $region45: #{fcos_detector_inference.7} parent=43 // pred_check
          %p561 = pneg %p192
        $region46: #{fcos_detector_inference.7} parent=43 // pred_check_branch
          %563 = sbr.rel (%p561) target = $region48
        $region47: #{fcos_detector_inference.7} parent=43 // pred_region
          %565 = vsyncadd %s550, 0
          %s566 = smul.addr %s26, 2
          %s567 = sadd.s32 %s27, %s566
          %s568 = smul.addr %s567, 4
          %s569 = scalar_lea.hbm %s6, %s568
          %s570 = sshll.u32 %s553, 4
          %s571 = int_to_ptr.vmem [resolvable:$true] %s570
          %s572 = sshll.u32 %s569, 4
          %s573 = int_to_ptr.hbm [resolvable:$true] %s572
          %578 = dma.vmem_to_hbm [thread:$0]  %s571, 128, %s573, %s550, 64, 64, 4
        $region48: #{fcos_detector_inference.7} parent=43 // pred_fallthru
          _
        // Predicated region
        $region49: #{fcos_detector_inference.7} parent=43 // pred_check
          %p579 = pneg %p220
        $region50: #{fcos_detector_inference.7} parent=43 // pred_check_branch
          %581 = sbr.rel (%p579) target = $region52
        $region51: #{fcos_detector_inference.7} parent=43 // pred_region
          _
        $region52: #{fcos_detector_inference.7} parent=43 // pred_fallthru
          _
      $region44: #{fcos_detector_inference.7} parent=5 // pred_fallthru
        _
      %p582 = scmp.le.s32.totalorder 2, %s17
      // Predicated region
      $region53: #{fcos_detector_inference.7} parent=5 // pred_check
        %p583 = pneg %p582
      $region54: #{fcos_detector_inference.7} parent=5 // pred_check_branch
        %585 = sbr.rel (%p583) target = $region56
      $region55: #{fcos_detector_inference.7} parent=5 // pred_region
        %s586 = ssub.s32 %s17, 2
        // Predicated region
        $region57: #{fcos_detector_inference.7} parent=55 // pred_check
          %p587 = pneg %p198
        $region58: #{fcos_detector_inference.7} parent=55 // pred_check_branch
          %589 = sbr.rel (%p587) target = $region60
        $region59: #{fcos_detector_inference.7} parent=55 // pred_region
          %s590 = sand.u32 %s183, 1
          %s591 = scalar_lea.sflag [#allocation3], %s590
          %s592 = sand.u32 %s183, 1
          %s593 = smul.addr %s592, 8
          %s594 = scalar_lea.vmem [#allocation2], %s593
          %596 = dma.done %s591, 128
        $region60: #{fcos_detector_inference.7} parent=55 // pred_fallthru
          _
        // Predicated region
        $region61: #{fcos_detector_inference.7} parent=55 // pred_check
          %p597 = pneg %p226
        $region62: #{fcos_detector_inference.7} parent=55 // pred_check_branch
          %599 = sbr.rel (%p597) target = $region64
        $region63: #{fcos_detector_inference.7} parent=55 // pred_region
          %p600 = scmp.lt.s32.totalorder %s28, 1
          %s601 = scalar_select %p600, %s28, 1
          %p602 = scmp.lt.s32.totalorder %s29, 0
          %s603 = scalar_select %p602, %s29, 0
          %s604 = sadd.s32 %s603, %s601
          %s605 = smul.addr %s604, 8
          %s606 = scalar_lea.vmem %s7, %s605
        $region64: #{fcos_detector_inference.7} parent=55 // pred_fallthru
          _
      $region56: #{fcos_detector_inference.7} parent=5 // pred_fallthru
        _
    $region6: #{fcos_detector_inference.7} parent=1 // loop_footer
      %s21 = sadd.s32 1, %s17
    $region7: #{fcos_detector_inference.7} parent=1 // loop_footer_branch
      %16 = sbr.rel target = $region3
    $region8: #{fcos_detector_inference.7} parent=1 // loop_exit
      _
    %607 = vsyncpa [#allocation3], 1
    %s608 = scalar_lea.sflag [#allocation3], 1
    %609 = vsyncpa %s608, 1

</llo_original>
